<compile_context>
chip_gen: v7x
topology: tpu7x:2x2x1
jax: 0.10.0
libtpu: 0.0.40
codegen_flags: <defaults>
</compile_context>

<pallas_src>
import functools

import jax
import jax.numpy as jnp
from jax.experimental import pallas as pl
from jax.experimental.pallas import tpu as pltpu

BN_EPS = 1e-5
_LANE = 128


# ---------------------------------------------------------------------------
# Kernel
# ---------------------------------------------------------------------------
def _layer_kernel_body(x_ref, w_ref, g_ref, be_ref, r_ref, o_ref, *, add_residual):
    k = pl.program_id(1)  # reduction (input-feature) axis, iterated last

    @pl.when(k == 0)
    def _():
        o_ref[...] = jnp.zeros_like(o_ref)

    # bf16 x bf16 -> f32 on the MXU; accumulate into the resident f32 output block.
    o_ref[...] += jnp.dot(
        x_ref[...].astype(jnp.bfloat16), w_ref[...],
        preferred_element_type=jnp.float32)

    @pl.when(k == pl.num_programs(1) - 1)
    def _():
        y = o_ref[...]                                   # (B, tn) f32, full batch
        mu = jnp.mean(y, axis=0, keepdims=True)          # batch mean (full batch)
        yc = y - mu                                      # centered once, reused
        var = jnp.mean(yc * yc, axis=0, keepdims=True)   # biased variance
        z = jnp.tanh(yc * jax.lax.rsqrt(var + BN_EPS) * g_ref[...] + be_ref[...])
        if add_residual:
            z = z + r_ref[...]
        o_ref[...] = z


def _make_layer_kernel(add_residual):
    if add_residual:
        def kernel(x_ref, w_ref, g_ref, be_ref, r_ref, o_ref):
            _layer_kernel_body(x_ref, w_ref, g_ref, be_ref, r_ref, o_ref,
                               add_residual=True)
    else:
        def kernel(x_ref, w_ref, g_ref, be_ref, o_ref):
            _layer_kernel_body(x_ref, w_ref, g_ref, be_ref, None, o_ref,
                               add_residual=False)
    return kernel


# ---------------------------------------------------------------------------
# Per-layer pallas_call wrapper
# ---------------------------------------------------------------------------
def _pick_tile(dim, cap=512):
    for t in (512, 256, 128):
        if t <= cap and dim % t == 0:
            return t
    raise ValueError(f"feature dim {dim} must be a multiple of {_LANE} lanes")


def _lin_bn_tanh_layer(x, w_bf16, gamma, beta, residual=None, *, tn=None, tk=None):
    """One fused Linear(no bias) + BatchNorm1d(train) + Tanh (+ optional residual)."""
    B, K = x.shape
    Kw, N = w_bf16.shape
    assert Kw == K
    assert B % 8 == 0, "batch must be a multiple of 8 sublanes"
    tn = _pick_tile(N) if tn is None else tn
    tk = _pick_tile(K) if tk is None else tk
    assert N % tn == 0 and K % tk == 0

    grid = (N // tn, K // tk)  # (output-feature blocks [parallel], K blocks [reduction, last])

    in_specs = [
        pl.BlockSpec((B, tk), lambda j, k: (0, k)),     # activations (f32), full batch
        pl.BlockSpec((tk, tn), lambda j, k: (k, j)),    # streamed weight tile (bf16)
        pl.BlockSpec((1, tn), lambda j, k: (0, j)),     # BN gamma
        pl.BlockSpec((1, tn), lambda j, k: (0, j)),     # BN beta
    ]
    args = [x, w_bf16, gamma, beta]
    if residual is not None:
        in_specs.append(pl.BlockSpec((B, tn), lambda j, k: (0, j)))  # residual block
        args.append(residual)

    # Scoped-VMEM budget: double-buffered x / w / residual tiles + resident output
    # block + BN params, with 2x headroom (floor 4 MiB, cap 48 MiB for v7x's 64 MiB VMEM).
    vmem_bytes = 2 * (B * tk * 4 + tk * tn * 2 + B * tn * 4 + B * tn * 4 + 2 * tn * 4)
    vmem_bytes = int(min(max(2 * vmem_bytes, 4 * 1024 * 1024), 48 * 1024 * 1024))

    return pl.pallas_call(
        _make_layer_kernel(residual is not None),
        out_shape=jax.ShapeDtypeStruct((B, N), jnp.float32),
        grid_spec=pltpu.PrefetchScalarGridSpec(
            num_scalar_prefetch=0,
            grid=grid,
            in_specs=in_specs,
            out_specs=pl.BlockSpec((B, tn), lambda j, k: (0, j)),
        ),
        compiler_params=pltpu.CompilerParams(
            dimension_semantics=("parallel", "arbitrary"),
            vmem_limit_bytes=vmem_bytes,
        ),
    )(*args)


# ---------------------------------------------------------------------------
# Full module forward
# ---------------------------------------------------------------------------
def _round_up(n, m):
    return ((n + m - 1) // m) * m


def _maybe_pad2(a, rows, cols, fill=0.0):
    r, c = a.shape
    if r == rows and c == cols:
        return a
    return jnp.pad(a, ((0, rows - r), (0, cols - c)), constant_values=fill)


def residual_ff(x, params, *, tn=None, tk=None):
    """x: (B, insize) f32.  Weights are stored as (in, out) = W^T.

    Linear biases are intentionally not consumed: training-mode BN cancels them.
    Feature dims are zero-padded to 128-lane multiples (padded columns provably stay
    zero through every layer) and sliced off at the end.
    """
    B, insize = x.shape
    outsize = params["w3"].shape[1]
    assert B % 8 == 0, "batch must be a multiple of 8 sublanes"
    # TODO(synk): mask BN batch statistics to support batch sizes that are not multiples of 8.

    ins_p = _round_up(max(insize, _LANE), _LANE)
    outs_p = _round_up(max(outsize, _LANE), _LANE)

    xp = _maybe_pad2(x, B, ins_p)
    w1 = _maybe_pad2(params["w1"], ins_p, ins_p).astype(jnp.bfloat16)
    w2 = _maybe_pad2(params["w2"], ins_p, ins_p).astype(jnp.bfloat16)
    w3 = _maybe_pad2(params["w3"], ins_p, outs_p).astype(jnp.bfloat16)
    g1 = _maybe_pad2(params["g1"], 1, ins_p, fill=1.0)
    g2 = _maybe_pad2(params["g2"], 1, ins_p, fill=1.0)
    g3 = _maybe_pad2(params["g3"], 1, outs_p, fill=1.0)
    be1 = _maybe_pad2(params["be1"], 1, ins_p)
    be2 = _maybe_pad2(params["be2"], 1, ins_p)
    be3 = _maybe_pad2(params["be3"], 1, outs_p)

    z1 = _lin_bn_tanh_layer(xp, w1, g1, be1, residual=xp, tn=tn, tk=tk)
    z2 = _lin_bn_tanh_layer(z1, w2, g2, be2, residual=z1, tn=tn, tk=tk)
    z3 = _lin_bn_tanh_layer(z2, w3, g3, be3, residual=None, tn=tn, tk=tk)
    return z3[:, :outsize] if outs_p != outsize else z3


# ---------------------------------------------------------------------------
# Parameters + pure-JAX reference
# ---------------------------------------------------------------------------
def make_params(key, insize, outsize):
    """Deterministic synthetic parameters (shapes match the nn.Module)."""
    ks = jax.random.split(key, 9)

    def linear(kw, kb, fin, fout):
        bound = 1.0 / jnp.sqrt(fin)
        w = jax.random.uniform(kw, (fin, fout), jnp.float32, -bound, bound)  # (in, out) = W^T
        b = jax.random.uniform(kb, (1, fout), jnp.float32, -bound, bound)
        return w, b

    w1, b1 = linear(ks[0], ks[1], insize, insize)
    w2, b2 = linear(ks[2], ks[3], insize, insize)
    w3, b3 = linear(ks[4], ks[5], insize, outsize)
    g1 = 1.0 + 0.1 * jax.random.normal(ks[6], (1, insize), jnp.float32)
    g2 = 1.0 + 0.1 * jax.random.normal(ks[7], (1, insize), jnp.float32)
    g3 = 1.0 + 0.1 * jax.random.normal(ks[8], (1, outsize), jnp.float32)
    be1 = jnp.full((1, insize), 0.01, jnp.float32)
    be2 = jnp.full((1, insize), -0.02, jnp.float32)
    be3 = jnp.full((1, outsize), 0.03, jnp.float32)
    return dict(w1=w1, b1=b1, g1=g1, be1=be1,
                w2=w2, b2=b2, g2=g2, be2=be2,
                w3=w3, b3=b3, g3=g3, be3=be3)


def residual_ff_ref(x, p, matmul_dtype=jnp.float32):
    """Pure-JAX reference mirroring the PyTorch forward (training-mode BN, bias included)."""
    def blk(h, w, b, g, be):
        if matmul_dtype == jnp.bfloat16:
            y = jnp.dot(h.astype(jnp.bfloat16), w.astype(jnp.bfloat16),
                        preferred_element_type=jnp.float32) + b
        else:
            y = jnp.dot(h, w, precision=jax.lax.Precision.HIGHEST) + b
        mu = y.mean(0, keepdims=True)
        var = ((y - mu) ** 2).mean(0, keepdims=True)
        return jnp.tanh((y - mu) / jnp.sqrt(var + BN_EPS) * g + be)

    z1 = blk(x, p["w1"], p["b1"], p["g1"], p["be1"]) + x
    z2 = blk(z1, p["w2"], p["b2"], p["g2"], p["be2"]) + z1
    return blk(z2, p["w3"], p["b3"], p["g3"], p["be3"])


def _check(out, x, params, tag):
    ref_bf16 = residual_ff_ref(x, params, matmul_dtype=jnp.bfloat16)
    err_bf16 = float(jnp.max(jnp.abs(out - ref_bf16)))
    assert err_bf16 < 1e-2, f"[{tag}] mismatch vs bf16-matmul reference: {err_bf16}"
    ref_f32 = residual_ff_ref(x, params, matmul_dtype=jnp.float32)
    err_f32 = float(jnp.max(jnp.abs(out - ref_f32)))
    assert err_f32 < 1e-1, f"[{tag}] mismatch vs f32 reference: {err_f32}"


if __name__ == "__main__":
    key = jax.random.PRNGKey(0)

    # ---- Case 1: lane/sublane-aligned shapes, multi-step grid (2x2 blocks). ----
    B, insize, outsize = 128, 256, 128
    kx, kp, key = jax.random.split(key, 3)
    x = jax.random.normal(kx, (B, insize), jnp.float32)
    params = make_params(kp, insize, outsize)
    fwd_aligned = jax.jit(functools.partial(residual_ff, tn=128, tk=128))
    out = jax.block_until_ready(fwd_aligned(x, params))
    assert out.shape == (B, outsize) and out.dtype == jnp.float32
    _check(out, x, params, "aligned")

    # ---- Case 2: unaligned feature dims exercise the zero-padding path. ----
    B2, insize2, outsize2 = 64, 200, 72
    kx2, kp2 = jax.random.split(key)
    x2 = jax.random.normal(kx2, (B2, insize2), jnp.float32)
    params2 = make_params(kp2, insize2, outsize2)
    out2 = jax.block_until_ready(jax.jit(residual_ff)(x2, params2))
    assert out2.shape == (B2, outsize2) and out2.dtype == jnp.float32
    _check(out2, x2, params2, "padded")

    print("KERNEL_OK")
</pallas_src>

<mosaic_0001>
module attributes {stable_mosaic.version = 11 : i64} {
  func.func @kernel(%arg0: i32, %arg1: i32, %arg2: memref<128x128xf32, #tpu.memory_space<vmem>>, %arg3: memref<128x128xbf16, #tpu.memory_space<vmem>>, %arg4: memref<1x128xf32, #tpu.memory_space<vmem>>, %arg5: memref<1x128xf32, #tpu.memory_space<vmem>>, %arg6: memref<128x128xf32, #tpu.memory_space<vmem>>, %arg7: memref<128x128xf32, #tpu.memory_space<vmem>>) attributes {dimension_semantics = [#tpu.dimension_semantics<parallel>, #tpu.dimension_semantics<arbitrary>], iteration_bounds = array<i64: 2, 2>, scalar_prefetch = 0 : i64, scratch_operands = 0 : i64, tpu.core_type = #tpu.core_type<tc>, window_params = [{transform_indices = @transform_0, window_bounds = array<i64: 128, 128>}, {transform_indices = @transform_1, window_bounds = array<i64: 128, 128>}, {transform_indices = @transform_2, window_bounds = array<i64: 1, 128>}, {transform_indices = @transform_3, window_bounds = array<i64: 1, 128>}, {transform_indices = @transform_4, window_bounds = array<i64: 128, 128>}, {transform_indices = @transform_5, window_bounds = array<i64: 128, 128>}]} {
    %c0_i32 = arith.constant 0 : i32
    %0 = arith.cmpi eq, %arg1, %c0_i32 : i32
    %1 = arith.extui %0 : i1 to i32
    %c0_i32_0 = arith.constant 0 : i32
    %2 = arith.cmpi ne, %1, %c0_i32_0 : i32
    scf.if %2 {
      %cst_9 = arith.constant 0.000000e+00 : f32
      %13 = vector.broadcast %cst_9 : f32 to vector<128x128xf32>
      %c0_10 = arith.constant 0 : index
      %c0_11 = arith.constant 0 : index
      %14 = vector.load %arg7[%c0_10, %c0_11] : memref<128x128xf32, #tpu.memory_space<vmem>>, vector<128x128xf32>
      tpu.vector_store %arg7[%c0_10, %c0_11], %13 {strides = array<i32>} : memref<128x128xf32, #tpu.memory_space<vmem>>, vector<128x128xf32>,
    } else {
    }
    %c0 = arith.constant 0 : index
    %c0_1 = arith.constant 0 : index
    %3 = vector.load %arg7[%c0, %c0_1] : memref<128x128xf32, #tpu.memory_space<vmem>>, vector<128x128xf32>
    %c0_2 = arith.constant 0 : index
    %c0_3 = arith.constant 0 : index
    %4 = vector.load %arg2[%c0_2, %c0_3] : memref<128x128xf32, #tpu.memory_space<vmem>>, vector<128x128xf32>
    %5 = arith.truncf %4 : vector<128x128xf32> to vector<128x128xbf16>
    %c0_4 = arith.constant 0 : index
    %c0_5 = arith.constant 0 : index
    %6 = vector.load %arg3[%c0_4, %c0_5] : memref<128x128xbf16, #tpu.memory_space<vmem>>, vector<128x128xbf16>
    %cst = arith.constant dense<0.000000e+00> : vector<128x128xf32>
    %7 = tpu.matmul %5, %6, %cst {dimension_numbers = #tpu.dot_dimension_numbers<[1], [0], [0], [1], [0, 0, 1, 1], [], []>} : vector<128x128xbf16>, vector<128x128xbf16>, vector<128x128xf32> -> vector<128x128xf32>
    %8 = arith.addf %3, %7 : vector<128x128xf32>
    %c0_6 = arith.constant 0 : index
    %c0_7 = arith.constant 0 : index
    %9 = vector.load %arg7[%c0_6, %c0_7] : memref<128x128xf32, #tpu.memory_space<vmem>>, vector<128x128xf32>
    tpu.vector_store %arg7[%c0_6, %c0_7], %8 {strides = array<i32>} : memref<128x128xf32, #tpu.memory_space<vmem>>, vector<128x128xf32>,
    %c1_i32 = arith.constant 1 : i32
    %10 = arith.cmpi eq, %arg1, %c1_i32 : i32
    %11 = arith.extui %10 : i1 to i32
    %c0_i32_8 = arith.constant 0 : i32
    %12 = arith.cmpi ne, %11, %c0_i32_8 : i32
    scf.if %12 {
      %c0_9 = arith.constant 0 : index
      %c0_10 = arith.constant 0 : index
      %13 = vector.load %arg7[%c0_9, %c0_10] : memref<128x128xf32, #tpu.memory_space<vmem>>, vector<128x128xf32>
      %cst_11 = arith.constant dense<0.000000e+00> : vector<128xf32>
      %14 = vector.multi_reduction <add>, %13, %cst_11 [0] : vector<128x128xf32> to vector<128xf32>
      %15 = vector.shape_cast %14 : vector<128xf32> to vector<1x128xf32>
      %cst_12 = arith.constant 1.280000e+02 : f32
      %16 = vector.broadcast %cst_12 : f32 to vector<1x128xf32>
      %17 = arith.divf %15, %16 : vector<1x128xf32>
      %18 = vector.broadcast %17 : vector<1x128xf32> to vector<128x128xf32>
      %19 = arith.subf %13, %18 : vector<128x128xf32>
      %20 = arith.mulf %19, %19 : vector<128x128xf32>
      %cst_13 = arith.constant dense<0.000000e+00> : vector<128xf32>
      %21 = vector.multi_reduction <add>, %20, %cst_13 [0] : vector<128x128xf32> to vector<128xf32>
      %22 = vector.shape_cast %21 : vector<128xf32> to vector<1x128xf32>
      %cst_14 = arith.constant 1.280000e+02 : f32
      %23 = vector.broadcast %cst_14 : f32 to vector<1x128xf32>
      %24 = arith.divf %22, %23 : vector<1x128xf32>
      %cst_15 = arith.constant 9.99999974E-6 : f32
      %25 = vector.broadcast %cst_15 : f32 to vector<1x128xf32>
      %26 = arith.addf %24, %25 : vector<1x128xf32>
      %27 = math.rsqrt %26 : vector<1x128xf32>
      %28 = vector.broadcast %27 : vector<1x128xf32> to vector<128x128xf32>
      %29 = arith.mulf %19, %28 : vector<128x128xf32>
      %c0_16 = arith.constant 0 : index
      %c0_17 = arith.constant 0 : index
      %30 = vector.load %arg4[%c0_16, %c0_17] : memref<1x128xf32, #tpu.memory_space<vmem>>, vector<1x128xf32>
      %31 = vector.broadcast %30 : vector<1x128xf32> to vector<128x128xf32>
      %32 = arith.mulf %29, %31 : vector<128x128xf32>
      %c0_18 = arith.constant 0 : index
      %c0_19 = arith.constant 0 : index
      %33 = vector.load %arg5[%c0_18, %c0_19] : memref<1x128xf32, #tpu.memory_space<vmem>>, vector<1x128xf32>
      %34 = vector.broadcast %33 : vector<1x128xf32> to vector<128x128xf32>
      %35 = arith.addf %32, %34 : vector<128x128xf32>
      %36 = math.tanh %35 : vector<128x128xf32>
      %c0_20 = arith.constant 0 : index
      %c0_21 = arith.constant 0 : index
      %37 = vector.load %arg6[%c0_20, %c0_21] : memref<128x128xf32, #tpu.memory_space<vmem>>, vector<128x128xf32>
      %38 = arith.addf %36, %37 : vector<128x128xf32>
      %c0_22 = arith.constant 0 : index
      %c0_23 = arith.constant 0 : index
      %39 = vector.load %arg7[%c0_22, %c0_23] : memref<128x128xf32, #tpu.memory_space<vmem>>, vector<128x128xf32>
      tpu.vector_store %arg7[%c0_22, %c0_23], %38 {strides = array<i32>} : memref<128x128xf32, #tpu.memory_space<vmem>>, vector<128x128xf32>,
    } else {
    }
    return
  }
  func.func @transform_0(%arg0: i32, %arg1: i32) -> (i32, i32) {
    %c0_i32 = arith.constant 0 : i32
    %c0_i32_0 = arith.constant 0 : i32
    return %c0_i32, %arg1 : i32, i32
  }
  func.func @transform_1(%arg0: i32, %arg1: i32) -> (i32, i32) {
    %c0_i32 = arith.constant 0 : i32
    return %arg1, %arg0 : i32, i32
  }
  func.func @transform_2(%arg0: i32, %arg1: i32) -> (i32, i32) {
    %c0_i32 = arith.constant 0 : i32
    %c0_i32_0 = arith.constant 0 : i32
    return %c0_i32, %arg0 : i32, i32
  }
  func.func @transform_3(%arg0: i32, %arg1: i32) -> (i32, i32) {
    %c0_i32 = arith.constant 0 : i32
    %c0_i32_0 = arith.constant 0 : i32
    return %c0_i32, %arg0 : i32, i32
  }
  func.func @transform_4(%arg0: i32, %arg1: i32) -> (i32, i32) {
    %c0_i32 = arith.constant 0 : i32
    %c0_i32_0 = arith.constant 0 : i32
    return %c0_i32, %arg0 : i32, i32
  }
  func.func @transform_5(%arg0: i32, %arg1: i32) -> (i32, i32) {
    %c0_i32 = arith.constant 0 : i32
    %c0_i32_0 = arith.constant 0 : i32
    return %c0_i32, %arg0 : i32, i32
  }
}

module attributes {stable_mosaic.version = 11 : i64} {
  func.func @kernel(%arg0: i32, %arg1: i32, %arg2: memref<128x128xf32, #tpu.memory_space<vmem>>, %arg3: memref<128x128xbf16, #tpu.memory_space<vmem>>, %arg4: memref<1x128xf32, #tpu.memory_space<vmem>>, %arg5: memref<1x128xf32, #tpu.memory_space<vmem>>, %arg6: memref<128x128xf32, #tpu.memory_space<vmem>>) attributes {dimension_semantics = [#tpu.dimension_semantics<parallel>, #tpu.dimension_semantics<arbitrary>], iteration_bounds = array<i64: 1, 2>, scalar_prefetch = 0 : i64, scratch_operands = 0 : i64, tpu.core_type = #tpu.core_type<tc>, window_params = [{transform_indices = @transform_0, window_bounds = array<i64: 128, 128>}, {transform_indices = @transform_1, window_bounds = array<i64: 128, 128>}, {transform_indices = @transform_2, window_bounds = array<i64: 1, 128>}, {transform_indices = @transform_3, window_bounds = array<i64: 1, 128>}, {transform_indices = @transform_4, window_bounds = array<i64: 128, 128>}]} {
    %c0_i32 = arith.constant 0 : i32
    %0 = arith.cmpi eq, %arg1, %c0_i32 : i32
    %1 = arith.extui %0 : i1 to i32
    %c0_i32_0 = arith.constant 0 : i32
    %2 = arith.cmpi ne, %1, %c0_i32_0 : i32
    scf.if %2 {
      %cst_9 = arith.constant 0.000000e+00 : f32
      %13 = vector.broadcast %cst_9 : f32 to vector<128x128xf32>
      %c0_10 = arith.constant 0 : index
      %c0_11 = arith.constant 0 : index
      %14 = vector.load %arg6[%c0_10, %c0_11] : memref<128x128xf32, #tpu.memory_space<vmem>>, vector<128x128xf32>
      tpu.vector_store %arg6[%c0_10, %c0_11], %13 {strides = array<i32>} : memref<128x128xf32, #tpu.memory_space<vmem>>, vector<128x128xf32>,
    } else {
    }
    %c0 = arith.constant 0 : index
    %c0_1 = arith.constant 0 : index
    %3 = vector.load %arg6[%c0, %c0_1] : memref<128x128xf32, #tpu.memory_space<vmem>>, vector<128x128xf32>
    %c0_2 = arith.constant 0 : index
    %c0_3 = arith.constant 0 : index
    %4 = vector.load %arg2[%c0_2, %c0_3] : memref<128x128xf32, #tpu.memory_space<vmem>>, vector<128x128xf32>
    %5 = arith.truncf %4 : vector<128x128xf32> to vector<128x128xbf16>
    %c0_4 = arith.constant 0 : index
    %c0_5 = arith.constant 0 : index
    %6 = vector.load %arg3[%c0_4, %c0_5] : memref<128x128xbf16, #tpu.memory_space<vmem>>, vector<128x128xbf16>
    %cst = arith.constant dense<0.000000e+00> : vector<128x128xf32>
    %7 = tpu.matmul %5, %6, %cst {dimension_numbers = #tpu.dot_dimension_numbers<[1], [0], [0], [1], [0, 0, 1, 1], [], []>} : vector<128x128xbf16>, vector<128x128xbf16>, vector<128x128xf32> -> vector<128x128xf32>
    %8 = arith.addf %3, %7 : vector<128x128xf32>
    %c0_6 = arith.constant 0 : index
    %c0_7 = arith.constant 0 : index
    %9 = vector.load %arg6[%c0_6, %c0_7] : memref<128x128xf32, #tpu.memory_space<vmem>>, vector<128x128xf32>
    tpu.vector_store %arg6[%c0_6, %c0_7], %8 {strides = array<i32>} : memref<128x128xf32, #tpu.memory_space<vmem>>, vector<128x128xf32>,
    %c1_i32 = arith.constant 1 : i32
    %10 = arith.cmpi eq, %arg1, %c1_i32 : i32
    %11 = arith.extui %10 : i1 to i32
    %c0_i32_8 = arith.constant 0 : i32
    %12 = arith.cmpi ne, %11, %c0_i32_8 : i32
    scf.if %12 {
      %c0_9 = arith.constant 0 : index
      %c0_10 = arith.constant 0 : index
      %13 = vector.load %arg6[%c0_9, %c0_10] : memref<128x128xf32, #tpu.memory_space<vmem>>, vector<128x128xf32>
      %cst_11 = arith.constant dense<0.000000e+00> : vector<128xf32>
      %14 = vector.multi_reduction <add>, %13, %cst_11 [0] : vector<128x128xf32> to vector<128xf32>
      %15 = vector.shape_cast %14 : vector<128xf32> to vector<1x128xf32>
      %cst_12 = arith.constant 1.280000e+02 : f32
      %16 = vector.broadcast %cst_12 : f32 to vector<1x128xf32>
      %17 = arith.divf %15, %16 : vector<1x128xf32>
      %18 = vector.broadcast %17 : vector<1x128xf32> to vector<128x128xf32>
      %19 = arith.subf %13, %18 : vector<128x128xf32>
      %20 = arith.mulf %19, %19 : vector<128x128xf32>
      %cst_13 = arith.constant dense<0.000000e+00> : vector<128xf32>
      %21 = vector.multi_reduction <add>, %20, %cst_13 [0] : vector<128x128xf32> to vector<128xf32>
      %22 = vector.shape_cast %21 : vector<128xf32> to vector<1x128xf32>
      %cst_14 = arith.constant 1.280000e+02 : f32
      %23 = vector.broadcast %cst_14 : f32 to vector<1x128xf32>
      %24 = arith.divf %22, %23 : vector<1x128xf32>
      %cst_15 = arith.constant 9.99999974E-6 : f32
      %25 = vector.broadcast %cst_15 : f32 to vector<1x128xf32>
      %26 = arith.addf %24, %25 : vector<1x128xf32>
      %27 = math.rsqrt %26 : vector<1x128xf32>
      %28 = vector.broadcast %27 : vector<1x128xf32> to vector<128x128xf32>
      %29 = arith.mulf %19, %28 : vector<128x128xf32>
      %c0_16 = arith.constant 0 : index
      %c0_17 = arith.constant 0 : index
      %30 = vector.load %arg4[%c0_16, %c0_17] : memref<1x128xf32, #tpu.memory_space<vmem>>, vector<1x128xf32>
      %31 = vector.broadcast %30 : vector<1x128xf32> to vector<128x128xf32>
      %32 = arith.mulf %29, %31 : vector<128x128xf32>
      %c0_18 = arith.constant 0 : index
      %c0_19 = arith.constant 0 : index
      %33 = vector.load %arg5[%c0_18, %c0_19] : memref<1x128xf32, #tpu.memory_space<vmem>>, vector<1x128xf32>
      %34 = vector.broadcast %33 : vector<1x128xf32> to vector<128x128xf32>
      %35 = arith.addf %32, %34 : vector<128x128xf32>
      %36 = math.tanh %35 : vector<128x128xf32>
      %c0_20 = arith.constant 0 : index
      %c0_21 = arith.constant 0 : index
      %37 = vector.load %arg6[%c0_20, %c0_21] : memref<128x128xf32, #tpu.memory_space<vmem>>, vector<128x128xf32>
      tpu.vector_store %arg6[%c0_20, %c0_21], %36 {strides = array<i32>} : memref<128x128xf32, #tpu.memory_space<vmem>>, vector<128x128xf32>,
    } else {
    }
    return
  }
  func.func @transform_0(%arg0: i32, %arg1: i32) -> (i32, i32) {
    %c0_i32 = arith.constant 0 : i32
    %c0_i32_0 = arith.constant 0 : i32
    return %c0_i32, %arg1 : i32, i32
  }
  func.func @transform_1(%arg0: i32, %arg1: i32) -> (i32, i32) {
    %c0_i32 = arith.constant 0 : i32
    return %arg1, %arg0 : i32, i32
  }
  func.func @transform_2(%arg0: i32, %arg1: i32) -> (i32, i32) {
    %c0_i32 = arith.constant 0 : i32
    %c0_i32_0 = arith.constant 0 : i32
    return %c0_i32, %arg0 : i32, i32
  }
  func.func @transform_3(%arg0: i32, %arg1: i32) -> (i32, i32) {
    %c0_i32 = arith.constant 0 : i32
    %c0_i32_0 = arith.constant 0 : i32
    return %c0_i32, %arg0 : i32, i32
  }
  func.func @transform_4(%arg0: i32, %arg1: i32) -> (i32, i32) {
    %c0_i32 = arith.constant 0 : i32
    %c0_i32_0 = arith.constant 0 : i32
    return %c0_i32, %arg0 : i32, i32
  }
}

</mosaic_0001>

<llo_original>
// kernel: residual_ff.5
$region0: #{residual_ff.5}
  #allocation0 [shape = 'u32[]', space=smem, size = 0x4, offset = 0x4, fixed_abs, tag = 'smem constant byte address 0x4 - core index']
  #allocation1 [shape = 'u32[144,128]{1,0:T(1,128)}', space=vmem, size = 0x12000, scoped, tag = 'internal scratch']
  %s0 = inlined_call_operand.vmem [shape: f32[128,256], index: 0, kind: input, shape index: {}]
  %s1 = inlined_call_operand.vmem [shape: bf16[256,128], index: 1, kind: input, shape index: {}]
  %s2 = inlined_call_operand.vmem [shape: f32[1,128], index: 2, kind: input, shape index: {}]
  %s3 = inlined_call_operand.vmem [shape: f32[1,128], index: 3, kind: input, shape index: {}]
  %s4 = inlined_call_operand.hbm [shape: f32[128,128], index: 4, kind: output, shape index: {}]
  %s5 = sld [smem:[#allocation0]]
  $region95: #{residual_ff.5} parent=0
    _
  %s7 = ssub.s32 1, %s5
  %s8 = scalar_select 0, %s7, %s5
  $region1: #{residual_ff.5} parent=0
    #allocation2 [shape = 'u8[131072]{0}', space=vmem, size = 0x20000, scoped, tag = 'input window, operand 0']
    #allocation3 [shape = 'u8[65536]{0}', space=vmem, size = 0x10000, scoped, tag = 'output window, operand 0, single buffered']
    #allocation4 [shape = 's32[2]{0}', space=sflag, size = 0x8, scoped, tag = 'scoped memory for residual_ff.5']
    %9 = vsyncpa [#allocation4], 0
    loop: start=0, step=1, limit=4
    $region2: #{residual_ff.5} parent=1 // loop_pre_header
      _
    $region3: #{residual_ff.5} parent=1 // loop_header
      %s11 = sphi 0, %s15
      %p12 = scmp.ge.s32.totalorder %s11, 4
      %s18 = sphi 0, %s30
      %s19 = sphi 0, %s26
      %s20 = sphi 0, %s18
      %s21 = sphi 0, %s19
      %s22 = sphi 0, %s20
      %s23 = sphi 0, %s21
      %s33 = sphi 0, %s35
      %s36 = sphi 0, %s33
      %s37 = sphi 0, %s36
      %s53 = sphi 0, %s37
      %s61 = sphi 0, %s63
      %s64 = sphi 0, %s61
      %s65 = sphi 0, %s64
      %s81 = sphi 0, %s65
      %s87 = sphi 0, %s89
      %s90 = sphi 0, %s87
      %s91 = sphi 0, %s90
      %s107 = sphi 0, %s91
      %s113 = sphi 0, %s115
      %s116 = sphi 0, %s113
      %s117 = sphi 0, %s116
      %s133 = sphi 0, %s117
      %s139 = sphi 0, %s141
      %s142 = sphi 0, %s139
      %s143 = sphi 0, %s142
      %s159 = sphi 0, %s143
    $region4: #{residual_ff.5} parent=1 // loop_header_branch
      %14 = sbr.rel (%p12) target = $region8
    $region5: #{residual_ff.5} parent=1 // loop_body
      %s16 = ssub.s32 %s11, 1
      %s17 = ssub.s32 %s11, 2
      %s24 = sadd.s32 1, %s19
      %p25 = scmp.ge.s32.totalorder %s24, 2
      %s26 = scalar_select %p25, 0, %s24
      %s27 = sadd.s32 1, %s18
      %s28 = scalar_select %p25, %s27, %s18
      %p29 = scmp.ge.s32.totalorder %s28, 1
      %s30 = scalar_select %p29, 0, %s28
      %s31 = ssub.s32 %s19, %s26
      %p32 = scmp.eq.s32.totalorder %s31, 0
      %s34 = sadd.s32 %s33, 1
      %s35 = scalar_select %p32, %s33, %s34
      %p38 = pneg %p32
      %p39 = scmp.eq.s32.totalorder %s11, 1
      %p40 = por %p38, %p39
      %p41 = scmp.ne.s32.totalorder %s33, %s36
      %p42 = scmp.eq.s32.totalorder %s11, 0
      %p43 = por %p41, %p42
      %p44 = scmp.ne.s32.totalorder %s33, %s36
      %p45 = scmp.eq.s32.totalorder %s16, 1
      %p46 = por %p44, %p45
      %p47 = scmp.ne.s32.totalorder %s36, %s37
      %p48 = scmp.eq.s32.totalorder %s16, 0
      %p49 = por %p47, %p48
      %p50 = scmp.ne.s32.totalorder %s36, %s37
      %p51 = scmp.eq.s32.totalorder %s17, 1
      %p52 = por %p50, %p51
      %p54 = scmp.ne.s32.totalorder %s37, %s53
      %p55 = scmp.eq.s32.totalorder %s17, 0
      %p56 = por %p54, %p55
      %s57 = ssub.s32 %s19, %s26
      %s58 = ssub.s32 %s18, %s30
      %s59 = sor.u32 %s57, %s58
      %p60 = scmp.eq.s32.totalorder %s59, 0
      %s62 = sadd.s32 %s61, 1
      %s63 = scalar_select %p60, %s61, %s62
      %p66 = pneg %p60
      %p67 = scmp.eq.s32.totalorder %s11, 1
      %p68 = por %p66, %p67
      %p69 = scmp.ne.s32.totalorder %s61, %s64
      %p70 = scmp.eq.s32.totalorder %s11, 0
      %p71 = por %p69, %p70
      %p72 = scmp.ne.s32.totalorder %s61, %s64
      %p73 = scmp.eq.s32.totalorder %s16, 1
      %p74 = por %p72, %p73
      %p75 = scmp.ne.s32.totalorder %s64, %s65
      %p76 = scmp.eq.s32.totalorder %s16, 0
      %p77 = por %p75, %p76
      %p78 = scmp.ne.s32.totalorder %s64, %s65
      %p79 = scmp.eq.s32.totalorder %s17, 1
      %p80 = por %p78, %p79
      %p82 = scmp.ne.s32.totalorder %s65, %s81
      %p83 = scmp.eq.s32.totalorder %s17, 0
      %p84 = por %p82, %p83
      %s85 = ssub.s32 %s18, %s30
      %p86 = scmp.eq.s32.totalorder %s85, 0
      %s88 = sadd.s32 %s87, 1
      %s89 = scalar_select %p86, %s87, %s88
      %p92 = pneg %p86
      %p93 = scmp.eq.s32.totalorder %s11, 1
      %p94 = por %p92, %p93
      %p95 = scmp.ne.s32.totalorder %s87, %s90
      %p96 = scmp.eq.s32.totalorder %s11, 0
      %p97 = por %p95, %p96
      %p98 = scmp.ne.s32.totalorder %s87, %s90
      %p99 = scmp.eq.s32.totalorder %s16, 1
      %p100 = por %p98, %p99
      %p101 = scmp.ne.s32.totalorder %s90, %s91
      %p102 = scmp.eq.s32.totalorder %s16, 0
      %p103 = por %p101, %p102
      %p104 = scmp.ne.s32.totalorder %s90, %s91
      %p105 = scmp.eq.s32.totalorder %s17, 1
      %p106 = por %p104, %p105
      %p108 = scmp.ne.s32.totalorder %s91, %s107
      %p109 = scmp.eq.s32.totalorder %s17, 0
      %p110 = por %p108, %p109
      %s111 = ssub.s32 %s18, %s30
      %p112 = scmp.eq.s32.totalorder %s111, 0
      %s114 = sadd.s32 %s113, 1
      %s115 = scalar_select %p112, %s113, %s114
      %p118 = pneg %p112
      %p119 = scmp.eq.s32.totalorder %s11, 1
      %p120 = por %p118, %p119
      %p121 = scmp.ne.s32.totalorder %s113, %s116
      %p122 = scmp.eq.s32.totalorder %s11, 0
      %p123 = por %p121, %p122
      %p124 = scmp.ne.s32.totalorder %s113, %s116
      %p125 = scmp.eq.s32.totalorder %s16, 1
      %p126 = por %p124, %p125
      %p127 = scmp.ne.s32.totalorder %s116, %s117
      %p128 = scmp.eq.s32.totalorder %s16, 0
      %p129 = por %p127, %p128
      %p130 = scmp.ne.s32.totalorder %s116, %s117
      %p131 = scmp.eq.s32.totalorder %s17, 1
      %p132 = por %p130, %p131
      %p134 = scmp.ne.s32.totalorder %s117, %s133
      %p135 = scmp.eq.s32.totalorder %s17, 0
      %p136 = por %p134, %p135
      %s137 = ssub.s32 %s18, %s30
      %p138 = scmp.eq.s32.totalorder %s137, 0
      %s140 = sadd.s32 %s139, 1
      %s141 = scalar_select %p138, %s139, %s140
      %p144 = pneg %p138
      %p145 = scmp.eq.s32.totalorder %s11, 1
      %p146 = por %p144, %p145
      %p147 = scmp.ne.s32.totalorder %s139, %s142
      %p148 = scmp.eq.s32.totalorder %s11, 0
      %p149 = por %p147, %p148
      %p150 = scmp.ne.s32.totalorder %s139, %s142
      %p151 = scmp.eq.s32.totalorder %s16, 1
      %p152 = por %p150, %p151
      %p153 = scmp.ne.s32.totalorder %s142, %s143
      %p154 = scmp.eq.s32.totalorder %s16, 0
      %p155 = por %p153, %p154
      %p156 = scmp.ne.s32.totalorder %s142, %s143
      %p157 = scmp.eq.s32.totalorder %s17, 1
      %p158 = por %p156, %p157
      %p160 = scmp.ne.s32.totalorder %s143, %s159
      %p161 = scmp.eq.s32.totalorder %s17, 0
      %p162 = por %p160, %p161
      %p163 = scmp.le.s32.totalorder 1, %s11
      %p164 = scmp.lt.s32.totalorder %s11, 3
      %p165 = pnand %p163, %p164
      %p166 = pneg %p165
      // Predicated region
      $region9: #{residual_ff.5} parent=5 // pred_check
        _
      $region10: #{residual_ff.5} parent=5 // pred_check_branch
        %168 = sbr.rel (%p165) target = $region12
      $region11: #{residual_ff.5} parent=5 // pred_region
        %s169 = ssub.s32 %s11, 1
        // Predicated region
        $region13: #{residual_ff.5} parent=11 // pred_check
          %p170 = pneg %p103
        $region14: #{residual_ff.5} parent=11 // pred_check_branch
          %172 = sbr.rel (%p170) target = $region16
        $region15: #{residual_ff.5} parent=11 // pred_region
          %p173 = scmp.lt.s32.totalorder %s20, 0
          %s174 = scalar_select %p173, %s20, 0
          %s175 = scalar_lea.vmem %s2, %s174
        $region16: #{residual_ff.5} parent=11 // pred_fallthru
          _
        // Predicated region
        $region17: #{residual_ff.5} parent=11 // pred_check
          %p176 = pneg %p129
        $region18: #{residual_ff.5} parent=11 // pred_check_branch
          %178 = sbr.rel (%p176) target = $region20
        $region19: #{residual_ff.5} parent=11 // pred_region
          %p179 = scmp.lt.s32.totalorder %s20, 0
          %s180 = scalar_select %p179, %s20, 0
          %s181 = scalar_lea.vmem %s3, %s180
        $region20: #{residual_ff.5} parent=11 // pred_fallthru
          _
      $region12: #{residual_ff.5} parent=5 // pred_fallthru
        _
      %p182 = scmp.lt.s32.totalorder %s11, 2
      // Predicated region
      $region21: #{residual_ff.5} parent=5 // pred_check
        %p183 = pneg %p182
      $region22: #{residual_ff.5} parent=5 // pred_check_branch
        %185 = sbr.rel (%p183) target = $region24
      $region23: #{residual_ff.5} parent=5 // pred_region
        // Predicated region
        $region25: #{residual_ff.5} parent=23 // pred_check
          %p186 = pneg %p43
        $region26: #{residual_ff.5} parent=23 // pred_check_branch
          %188 = sbr.rel (%p186) target = $region28
        $region27: #{residual_ff.5} parent=23 // pred_region
          %s189 = sand.u32 %s33, 1
          %s190 = sand.u32 %s33, 1
          %s191 = smul.addr %s190, 128
          %s192 = scalar_lea.vmem [#allocation2], %s191
          %s193 = smul.addr %s19, 8
          %s194 = scalar_lea.vmem %s0, %s193
          // Predicated region
          $region29: #{residual_ff.5} parent=27 // pred_check
            _
          $region30: #{residual_ff.5} parent=27 // pred_check_branch
            %196 = sbr.rel (0) target = $region32
          $region31: #{residual_ff.5} parent=27 // pred_region
            // Predicated region
            $region33: #{residual_ff.5} parent=31 // pred_check
              _
            $region34: #{residual_ff.5} parent=31 // pred_check_branch
              %198 = sbr.rel (0) target = $region36
            $region35: #{residual_ff.5} parent=31 // pred_region
              // Predicated region
              $region48: #{residual_ff.5} parent=35 // pred_check
                _
              $region49: #{residual_ff.5} parent=35 // pred_check_branch
                %243 = sbr.rel (0) target = $region51
              $region50: #{residual_ff.5} parent=35 // pred_region
                loop: start=0, step=1, limit=1
                $region52: #{residual_ff.5} parent=50 // loop_pre_header
                  _
                $region53: #{residual_ff.5} parent=50 // loop_header
                  %s245 = sphi 0, %s249
                  %p246 = scmp.ge.s32.totalorder %s245, 1
                  %s250 = sphi %s194, %s194
                  %s251 = sphi %s192, %s192
                $region54: #{residual_ff.5} parent=50 // loop_header_branch
                  %248 = sbr.rel (%p246) target = $region58
                $region55: #{residual_ff.5} parent=50 // loop_body
                  %v252 = vld [vmem:[%s250] sm:$0xff]
                  %253 = vst [vmem:[%s251] sm:$0xff] %v252
                  %v254 = vld [vmem:[%s250 + $0x10] sm:$0xff]
                  %255 = vst [vmem:[%s251 + $0x8] sm:$0xff] %v254
                  %v256 = vld [vmem:[%s250 + $0x20] sm:$0xff]
                  %257 = vst [vmem:[%s251 + $0x10] sm:$0xff] %v256
                  %v258 = vld [vmem:[%s250 + $0x30] sm:$0xff]
                  %259 = vst [vmem:[%s251 + $0x18] sm:$0xff] %v258
                  %v260 = vld [vmem:[%s250 + $0x40] sm:$0xff]
                  %261 = vst [vmem:[%s251 + $0x20] sm:$0xff] %v260
                  %v262 = vld [vmem:[%s250 + $0x50] sm:$0xff]
                  %263 = vst [vmem:[%s251 + $0x28] sm:$0xff] %v262
                  %v264 = vld [vmem:[%s250 + $0x60] sm:$0xff]
                  %265 = vst [vmem:[%s251 + $0x30] sm:$0xff] %v264
                  %v266 = vld [vmem:[%s250 + $0x70] sm:$0xff]
                  %267 = vst [vmem:[%s251 + $0x38] sm:$0xff] %v266
                  %v268 = vld [vmem:[%s250 + $0x80] sm:$0xff]
                  %269 = vst [vmem:[%s251 + $0x40] sm:$0xff] %v268
                  %v270 = vld [vmem:[%s250 + $0x90] sm:$0xff]
                  %271 = vst [vmem:[%s251 + $0x48] sm:$0xff] %v270
                  %v272 = vld [vmem:[%s250 + $0xa0] sm:$0xff]
                  %273 = vst [vmem:[%s251 + $0x50] sm:$0xff] %v272
                  %v274 = vld [vmem:[%s250 + $0xb0] sm:$0xff]
                  %275 = vst [vmem:[%s251 + $0x58] sm:$0xff] %v274
                  %v276 = vld [vmem:[%s250 + $0xc0] sm:$0xff]
                  %277 = vst [vmem:[%s251 + $0x60] sm:$0xff] %v276
                  %v278 = vld [vmem:[%s250 + $0xd0] sm:$0xff]
                  %279 = vst [vmem:[%s251 + $0x68] sm:$0xff] %v278
                  %v280 = vld [vmem:[%s250 + $0xe0] sm:$0xff]
                  %281 = vst [vmem:[%s251 + $0x70] sm:$0xff] %v280
                  %v282 = vld [vmem:[%s250 + $0xf0] sm:$0xff]
                  %283 = vst [vmem:[%s251 + $0x78] sm:$0xff] %v282
                $region56: #{residual_ff.5} parent=50 // loop_footer
                  %s249 = sadd.s32 1, %s245
                $region57: #{residual_ff.5} parent=50 // loop_footer_branch
                  %244 = sbr.rel target = $region53
                $region58: #{residual_ff.5} parent=50 // loop_exit
                  _
              $region51: #{residual_ff.5} parent=35 // pred_fallthru
                _
              // Predicated region
              $region59: #{residual_ff.5} parent=35 // pred_check
                _
              $region60: #{residual_ff.5} parent=35 // pred_check_branch
                %285 = sbr.rel target = $region62
              $region61: #{residual_ff.5} parent=35 // pred_region
                _
              $region62: #{residual_ff.5} parent=35 // pred_fallthru
                _
            $region36: #{residual_ff.5} parent=31 // pred_fallthru
              _
            // Predicated region
            $region37: #{residual_ff.5} parent=31 // pred_check
              _
            $region38: #{residual_ff.5} parent=31 // pred_check_branch
              %200 = sbr.rel target = $region40
            $region39: #{residual_ff.5} parent=31 // pred_region
              loop: start=0, step=1, limit=1
              $region41: #{residual_ff.5} parent=39 // loop_pre_header
                _
              $region42: #{residual_ff.5} parent=39 // loop_header
                %s203 = sphi 0, %s207
                %p204 = scmp.ge.s32.totalorder %s203, 1
                %s208 = sphi %s194, %s194
                %s209 = sphi %s192, %s192
              $region43: #{residual_ff.5} parent=39 // loop_header_branch
                %206 = sbr.rel (%p204) target = $region47
              $region44: #{residual_ff.5} parent=39 // loop_body
                %v210 = vld [vmem:[%s208] sm:$0xff]
                %211 = vst [vmem:[%s209] sm:$0xff] %v210
                %v212 = vld [vmem:[%s208 + $0x10] sm:$0xff]
                %213 = vst [vmem:[%s209 + $0x8] sm:$0xff] %v212
                %v214 = vld [vmem:[%s208 + $0x20] sm:$0xff]
                %215 = vst [vmem:[%s209 + $0x10] sm:$0xff] %v214
                %v216 = vld [vmem:[%s208 + $0x30] sm:$0xff]
                %217 = vst [vmem:[%s209 + $0x18] sm:$0xff] %v216
                %v218 = vld [vmem:[%s208 + $0x40] sm:$0xff]
                %219 = vst [vmem:[%s209 + $0x20] sm:$0xff] %v218
                %v220 = vld [vmem:[%s208 + $0x50] sm:$0xff]
                %221 = vst [vmem:[%s209 + $0x28] sm:$0xff] %v220
                %v222 = vld [vmem:[%s208 + $0x60] sm:$0xff]
                %223 = vst [vmem:[%s209 + $0x30] sm:$0xff] %v222
                %v224 = vld [vmem:[%s208 + $0x70] sm:$0xff]
                %225 = vst [vmem:[%s209 + $0x38] sm:$0xff] %v224
                %v226 = vld [vmem:[%s208 + $0x80] sm:$0xff]
                %227 = vst [vmem:[%s209 + $0x40] sm:$0xff] %v226
                %v228 = vld [vmem:[%s208 + $0x90] sm:$0xff]
                %229 = vst [vmem:[%s209 + $0x48] sm:$0xff] %v228
                %v230 = vld [vmem:[%s208 + $0xa0] sm:$0xff]
                %231 = vst [vmem:[%s209 + $0x50] sm:$0xff] %v230
                %v232 = vld [vmem:[%s208 + $0xb0] sm:$0xff]
                %233 = vst [vmem:[%s209 + $0x58] sm:$0xff] %v232
                %v234 = vld [vmem:[%s208 + $0xc0] sm:$0xff]
                %235 = vst [vmem:[%s209 + $0x60] sm:$0xff] %v234
                %v236 = vld [vmem:[%s208 + $0xd0] sm:$0xff]
                %237 = vst [vmem:[%s209 + $0x68] sm:$0xff] %v236
                %v238 = vld [vmem:[%s208 + $0xe0] sm:$0xff]
                %239 = vst [vmem:[%s209 + $0x70] sm:$0xff] %v238
                %v240 = vld [vmem:[%s208 + $0xf0] sm:$0xff]
                %241 = vst [vmem:[%s209 + $0x78] sm:$0xff] %v240
              $region45: #{residual_ff.5} parent=39 // loop_footer
                %s207 = sadd.s32 1, %s203
              $region46: #{residual_ff.5} parent=39 // loop_footer_branch
                %202 = sbr.rel target = $region42
              $region47: #{residual_ff.5} parent=39 // loop_exit
                _
            $region40: #{residual_ff.5} parent=31 // pred_fallthru
              _
          $region32: #{residual_ff.5} parent=27 // pred_fallthru
            _
          %286 = vnop
        $region28: #{residual_ff.5} parent=23 // pred_fallthru
          _
        // Predicated region
        $region63: #{residual_ff.5} parent=23 // pred_check
          %p287 = pneg %p71
        $region64: #{residual_ff.5} parent=23 // pred_check_branch
          %289 = sbr.rel (%p287) target = $region66
        $region65: #{residual_ff.5} parent=23 // pred_region
          %s290 = smul.u32 16, %s19
          %p291 = scmp.lt.s32.totalorder %s290, 31
          %s292 = scalar_select %p291, %s290, 31
          %p293 = scmp.lt.s32.totalorder %s18, 0
          %s294 = scalar_select %p293, %s18, 0
          %s295 = sadd.s32 %s294, %s292
          %s296 = smul.addr %s295, 4
          %s297 = scalar_lea.vmem %s1, %s296
          %s298 = smul.u32 16, %s19
        $region66: #{residual_ff.5} parent=23 // pred_fallthru
          _
      $region24: #{residual_ff.5} parent=5 // pred_fallthru
        _
      %p299 = scmp.le.s32.totalorder 1, %s11
      %p300 = scmp.lt.s32.totalorder %s11, 3
      %p301 = pnand %p299, %p300
      %p302 = pneg %p301
      // Predicated region
      $region67: #{residual_ff.5} parent=5 // pred_check
        _
      $region68: #{residual_ff.5} parent=5 // pred_check_branch
        %304 = sbr.rel (%p301) target = $region70
      $region69: #{residual_ff.5} parent=5 // pred_region
        %s305 = ssub.s32 %s11, 1
        %s306 = sand.u32 %s36, 1
        %s307 = sand.u32 %s36, 1
        %s308 = smul.addr %s307, 128
        %s309 = scalar_lea.vmem [#allocation2], %s308
        // Predicated region
        $region71: #{residual_ff.5} parent=69 // pred_check
          %p310 = pneg %p49
        $region72: #{residual_ff.5} parent=69 // pred_check_branch
          %312 = sbr.rel (%p310) target = $region74
        $region73: #{residual_ff.5} parent=69 // pred_region
          _
        $region74: #{residual_ff.5} parent=69 // pred_fallthru
          _
        %s313 = sand.u32 %s36, 1
        %s314 = sand.u32 %s36, 1
        %s315 = smul.addr %s314, 128
        %s316 = scalar_lea.vmem [#allocation2], %s315
        %p317 = pneg %p49
        %p318 = pneg %p46
        %s319 = smul.u32 16, %s21
        %p320 = scmp.lt.s32.totalorder %s319, 31
        %s321 = scalar_select %p320, %s319, 31
        %p322 = scmp.lt.s32.totalorder %s20, 0
        %s323 = scalar_select %p322, %s20, 0
        %s324 = sadd.s32 %s323, %s321
        %s325 = smul.addr %s324, 4
        %s326 = scalar_lea.vmem %s1, %s325
        %p327 = pneg %p77
        %p328 = pneg %p74
        %p329 = scmp.lt.s32.totalorder %s20, 0
        %s330 = scalar_select %p329, %s20, 0
        %s331 = scalar_lea.vmem %s2, %s330
        %p332 = pneg %p103
        %p333 = pneg %p100
        %p334 = scmp.lt.s32.totalorder %s20, 0
        %s335 = scalar_select %p334, %s20, 0
        %s336 = scalar_lea.vmem %s3, %s335
        %p337 = pneg %p129
        %p338 = pneg %p126
        %p339 = pneg %p155
        %p340 = pneg %p152
        %s341 = smul.u32 16, %s21
        %p342 = scmp.lt.s32.totalorder %s341, 31
        %s343 = scalar_select %p342, %s341, 31
        %p344 = scmp.lt.s32.totalorder %s20, 0
        %s345 = scalar_select %p344, %s20, 0
        %s346 = sadd.s32 %s345, %s343
        %s347 = smul.addr %s346, 4
        %s348 = scalar_lea.vmem %s1, %s347
        %s349 = smul.u32 16, %s21
        %p350 = scmp.lt.s32.totalorder %s20, 0
        %s351 = scalar_select %p350, %s20, 0
        %s352 = scalar_lea.vmem %s2, %s351
        %p353 = scmp.lt.s32.totalorder %s20, 0
        %s354 = scalar_select %p353, %s20, 0
        %s355 = scalar_lea.vmem %s3, %s354
        %p357 = scmp.eq.s32.totalorder %s21, 0
        // Predicated region
        $region75: #{residual_ff.5} parent=69 // pred_check
          %p358 = pneg %p357
        $region76: #{residual_ff.5} parent=69 // pred_check_branch
          %360 = sbr.rel (%p358) target = $region78
        $region77: #{residual_ff.5} parent=69 // pred_region
          %361 = vst [vmem:[#allocation3] sm:$0xff] 0.0
          %362 = vst [vmem:[#allocation3 + $0x8] sm:$0xff] 0.0
          %363 = vst [vmem:[#allocation3 + $0x10] sm:$0xff] 0.0
          %364 = vst [vmem:[#allocation3 + $0x18] sm:$0xff] 0.0
          %365 = vst [vmem:[#allocation3 + $0x20] sm:$0xff] 0.0
          %366 = vst [vmem:[#allocation3 + $0x28] sm:$0xff] 0.0
          %367 = vst [vmem:[#allocation3 + $0x30] sm:$0xff] 0.0
          %368 = vst [vmem:[#allocation3 + $0x38] sm:$0xff] 0.0
          %369 = vst [vmem:[#allocation3 + $0x40] sm:$0xff] 0.0
          %370 = vst [vmem:[#allocation3 + $0x48] sm:$0xff] 0.0
          %371 = vst [vmem:[#allocation3 + $0x50] sm:$0xff] 0.0
          %372 = vst [vmem:[#allocation3 + $0x58] sm:$0xff] 0.0
          %373 = vst [vmem:[#allocation3 + $0x60] sm:$0xff] 0.0
          %374 = vst [vmem:[#allocation3 + $0x68] sm:$0xff] 0.0
          %375 = vst [vmem:[#allocation3 + $0x70] sm:$0xff] 0.0
          %376 = vst [vmem:[#allocation3 + $0x78] sm:$0xff] 0.0
        $region78: #{residual_ff.5} parent=69 // pred_fallthru
          _
        %v377 = vld [vmem:[#allocation3] sm:$0xff]
        %v378 = vld [vmem:[#allocation3 + $0x8] sm:$0xff]
        %v379 = vld [vmem:[#allocation3 + $0x10] sm:$0xff]
        %v380 = vld [vmem:[#allocation3 + $0x18] sm:$0xff]
        %v381 = vld [vmem:[#allocation3 + $0x20] sm:$0xff]
        %v382 = vld [vmem:[#allocation3 + $0x28] sm:$0xff]
        %v383 = vld [vmem:[#allocation3 + $0x30] sm:$0xff]
        %v384 = vld [vmem:[#allocation3 + $0x38] sm:$0xff]
        %v385 = vld [vmem:[#allocation3 + $0x40] sm:$0xff]
        %v386 = vld [vmem:[#allocation3 + $0x48] sm:$0xff]
        %v387 = vld [vmem:[#allocation3 + $0x50] sm:$0xff]
        %v388 = vld [vmem:[#allocation3 + $0x58] sm:$0xff]
        %v389 = vld [vmem:[#allocation3 + $0x60] sm:$0xff]
        %v390 = vld [vmem:[#allocation3 + $0x68] sm:$0xff]
        %v391 = vld [vmem:[#allocation3 + $0x70] sm:$0xff]
        %v392 = vld [vmem:[#allocation3 + $0x78] sm:$0xff]
        %v393 = vld [vmem:[%s309] sm:$0xff]
        %v394 = vld [vmem:[%s309 + $0x8] sm:$0xff]
        %v395 = vld [vmem:[%s309 + $0x10] sm:$0xff]
        %v396 = vld [vmem:[%s309 + $0x18] sm:$0xff]
        %v397 = vld [vmem:[%s309 + $0x20] sm:$0xff]
        %v398 = vld [vmem:[%s309 + $0x28] sm:$0xff]
        %v399 = vld [vmem:[%s309 + $0x30] sm:$0xff]
        %v400 = vld [vmem:[%s309 + $0x38] sm:$0xff]
        %v401 = vld [vmem:[%s309 + $0x40] sm:$0xff]
        %v402 = vld [vmem:[%s309 + $0x48] sm:$0xff]
        %v403 = vld [vmem:[%s309 + $0x50] sm:$0xff]
        %v404 = vld [vmem:[%s309 + $0x58] sm:$0xff]
        %v405 = vld [vmem:[%s309 + $0x60] sm:$0xff]
        %v406 = vld [vmem:[%s309 + $0x68] sm:$0xff]
        %v407 = vld [vmem:[%s309 + $0x70] sm:$0xff]
        %v408 = vld [vmem:[%s309 + $0x78] sm:$0xff]
        %v409 = vpack.c.bf16 %v394, %v393
        %v410 = vpack.c.bf16 %v396, %v395
        %v411 = vpack.c.bf16 %v398, %v397
        %v412 = vpack.c.bf16 %v400, %v399
        %v413 = vpack.c.bf16 %v402, %v401
        %v414 = vpack.c.bf16 %v404, %v403
        %v415 = vpack.c.bf16 %v406, %v405
        %v416 = vpack.c.bf16 %v408, %v407
        %v417 = vld [vmem:[%s348] sm:$0xf]
        %v418 = vld [vmem:[%s348 + $0x4] sm:$0xf]
        %v419 = vld [vmem:[%s348 + $0x8] sm:$0xf]
        %v420 = vld [vmem:[%s348 + $0xc] sm:$0xf]
        %v421 = vld [vmem:[%s348 + $0x10] sm:$0xf]
        %v422 = vld [vmem:[%s348 + $0x14] sm:$0xf]
        %v423 = vld [vmem:[%s348 + $0x18] sm:$0xf]
        %v424 = vld [vmem:[%s348 + $0x1c] sm:$0xf]
        %v425 = vld [vmem:[%s348 + $0x20] sm:$0xf]
        %v426 = vld [vmem:[%s348 + $0x24] sm:$0xf]
        %v427 = vld [vmem:[%s348 + $0x28] sm:$0xf]
        %v428 = vld [vmem:[%s348 + $0x2c] sm:$0xf]
        %v429 = vld [vmem:[%s348 + $0x30] sm:$0xf]
        %v430 = vld [vmem:[%s348 + $0x34] sm:$0xf]
        %v431 = vld [vmem:[%s348 + $0x38] sm:$0xf]
        %v432 = vld [vmem:[%s348 + $0x3c] sm:$0xf]
        %v449 = vunpack.c.l.b16 %v417
        %v450 = vunpack.c.l.b16 %v418
        %v451 = vunpack.c.l.b16 %v419
        %v452 = vunpack.c.l.b16 %v420
        %v453 = vunpack.c.l.b16 %v421
        %v454 = vunpack.c.l.b16 %v422
        %v455 = vunpack.c.l.b16 %v423
        %v456 = vunpack.c.l.b16 %v424
        %v457 = vunpack.c.l.b16 %v425
        %v458 = vunpack.c.l.b16 %v426
        %v459 = vunpack.c.l.b16 %v427
        %v460 = vunpack.c.l.b16 %v428
        %v461 = vunpack.c.l.b16 %v429
        %v462 = vunpack.c.l.b16 %v430
        %v463 = vunpack.c.l.b16 %v431
        %v464 = vunpack.c.l.b16 %v432
        %v465 = vpack.c.b16 %v450, %v449
        %v466 = vpack.c.b16 %v452, %v451
        %v467 = vpack.c.b16 %v454, %v453
        %v468 = vpack.c.b16 %v456, %v455
        %v469 = vpack.c.b16 %v458, %v457
        %v470 = vpack.c.b16 %v460, %v459
        %v471 = vpack.c.b16 %v462, %v461
        %v472 = vpack.c.b16 %v464, %v463
        %481 = vmatprep.subr.bf16.mxu0 0
        %482 = vmatpush1.bf16.msra.mxu0 %v465
        %483 = vmatprep.subr.bf16.mxu0 0
        %484 = vmatpush1.bf16.msra.mxu0 %v466
        %485 = vmatprep.subr.bf16.mxu0 0
        %486 = vmatpush1.bf16.msra.mxu0 %v467
        %487 = vmatprep.subr.bf16.mxu0 0
        %488 = vmatpush1.bf16.msra.mxu0 %v468
        %489 = vmatprep.subr.bf16.mxu0 0
        %490 = vmatpush1.bf16.msra.mxu0 %v469
        %491 = vmatprep.subr.bf16.mxu0 0
        %492 = vmatpush1.bf16.msra.mxu0 %v470
        %493 = vmatprep.subr.bf16.mxu0 0
        %494 = vmatpush1.bf16.msra.mxu0 %v471
        %495 = vmatprep.subr.bf16.mxu0 0
        %496 = vmatpush1.bf16.msra.mxu0 %v472
        %497 = vmatprep.subr.bf16.mxu0 0
        %498 = vmatpush1.bf16.msra.mxu0 0
        %499 = vmatprep.subr.bf16.mxu0 0
        %500 = vmatpush1.bf16.msra.mxu0 0
        %501 = vmatprep.subr.bf16.mxu0 0
        %502 = vmatpush1.bf16.msra.mxu0 0
        %503 = vmatprep.subr.bf16.mxu0 0
        %504 = vmatpush1.bf16.msra.mxu0 0
        %505 = vmatprep.subr.bf16.mxu0 0
        %506 = vmatpush1.bf16.msra.mxu0 0
        %507 = vmatprep.subr.bf16.mxu0 0
        %508 = vmatpush1.bf16.msra.mxu0 0
        %509 = vmatprep.subr.bf16.mxu0 0
        %510 = vmatpush1.bf16.msra.mxu0 0
        %511 = vmatprep.subr.bf16.mxu0 0
        %512 = vmatpush1.bf16.msra.mxu0 0
        %513 = vmatprep.mubr.bf16.mxu0 0
        %514 = vmatmul.mubr.bf16.gmra.mrb[0].mxu0 %v409
        %v515 = vpop.f32.mrb[0].mxu0
        %v516 = vadd.f32 0.0, %v515
        %v517 = vpop.f32.mrb[0].mxu0
        %v518 = vpop.f32.mrb[0].mxu0
        %v519 = vadd.f32 0.0, %v518
        %v520 = vpop.f32.mrb[0].mxu0
        %521 = vmatprep.mubr.bf16.mxu0 0
        %522 = vmatmul.mubr.bf16.gmra.mrb[0].mxu0 %v410
        %v523 = vpop.f32.mrb[0].mxu0
        %v524 = vadd.f32 0.0, %v523
        %v525 = vpop.f32.mrb[0].mxu0
        %v526 = vpop.f32.mrb[0].mxu0
        %v527 = vadd.f32 0.0, %v526
        %v528 = vpop.f32.mrb[0].mxu0
        %529 = vmatprep.mubr.bf16.mxu0 0
        %530 = vmatmul.mubr.bf16.gmra.mrb[0].mxu0 %v411
        %v531 = vpop.f32.mrb[0].mxu0
        %v532 = vadd.f32 0.0, %v531
        %v533 = vpop.f32.mrb[0].mxu0
        %v534 = vpop.f32.mrb[0].mxu0
        %v535 = vadd.f32 0.0, %v534
        %v536 = vpop.f32.mrb[0].mxu0
        %537 = vmatprep.mubr.bf16.mxu0 0
        %538 = vmatmul.mubr.bf16.gmra.mrb[0].mxu0 %v412
        %v539 = vpop.f32.mrb[0].mxu0
        %v540 = vadd.f32 0.0, %v539
        %v541 = vpop.f32.mrb[0].mxu0
        %v542 = vpop.f32.mrb[0].mxu0
        %v543 = vadd.f32 0.0, %v542
        %v544 = vpop.f32.mrb[0].mxu0
        %545 = vmatprep.mubr.bf16.mxu0 0
        %546 = vmatmul.mubr.bf16.gmra.mrb[0].mxu0 %v413
        %v547 = vpop.f32.mrb[0].mxu0
        %v548 = vadd.f32 0.0, %v547
        %v549 = vpop.f32.mrb[0].mxu0
        %v550 = vpop.f32.mrb[0].mxu0
        %v551 = vadd.f32 0.0, %v550
        %v552 = vpop.f32.mrb[0].mxu0
        %553 = vmatprep.mubr.bf16.mxu0 0
        %554 = vmatmul.mubr.bf16.gmra.mrb[0].mxu0 %v414
        %v555 = vpop.f32.mrb[0].mxu0
        %v556 = vadd.f32 0.0, %v555
        %v557 = vpop.f32.mrb[0].mxu0
        %v558 = vpop.f32.mrb[0].mxu0
        %v559 = vadd.f32 0.0, %v558
        %v560 = vpop.f32.mrb[0].mxu0
        %561 = vmatprep.mubr.bf16.mxu0 0
        %562 = vmatmul.mubr.bf16.gmra.mrb[0].mxu0 %v415
        %v563 = vpop.f32.mrb[0].mxu0
        %v564 = vadd.f32 0.0, %v563
        %v565 = vpop.f32.mrb[0].mxu0
        %v566 = vpop.f32.mrb[0].mxu0
        %v567 = vadd.f32 0.0, %v566
        %v568 = vpop.f32.mrb[0].mxu0
        %569 = vmatprep.mubr.bf16.mxu0 0
        %570 = vmatmul.mubr.bf16.gmra.mrb[0].mxu0 %v416
        %v571 = vpop.f32.mrb[0].mxu0
        %v572 = vadd.f32 0.0, %v571
        %v573 = vpop.f32.mrb[0].mxu0
        %v574 = vpop.f32.mrb[0].mxu0
        %v575 = vadd.f32 0.0, %v574
        %v576 = vpop.f32.mrb[0].mxu0
        %577 = vdwg.mxu0
        %v578 = vadd.f32 %v377, %v516
        %v579 = vadd.f32 %v378, %v519
        %v580 = vadd.f32 %v379, %v524
        %v581 = vadd.f32 %v380, %v527
        %v582 = vadd.f32 %v381, %v532
        %v583 = vadd.f32 %v382, %v535
        %v584 = vadd.f32 %v383, %v540
        %v585 = vadd.f32 %v384, %v543
        %v586 = vadd.f32 %v385, %v548
        %v587 = vadd.f32 %v386, %v551
        %v588 = vadd.f32 %v387, %v556
        %v589 = vadd.f32 %v388, %v559
        %v590 = vadd.f32 %v389, %v564
        %v591 = vadd.f32 %v390, %v567
        %v592 = vadd.f32 %v391, %v572
        %v593 = vadd.f32 %v392, %v575
        %594 = vst [vmem:[#allocation3] sm:$0xff] %v578
        %595 = vst [vmem:[#allocation3 + $0x8] sm:$0xff] %v579
        %596 = vst [vmem:[#allocation3 + $0x10] sm:$0xff] %v580
        %597 = vst [vmem:[#allocation3 + $0x18] sm:$0xff] %v581
        %598 = vst [vmem:[#allocation3 + $0x20] sm:$0xff] %v582
        %599 = vst [vmem:[#allocation3 + $0x28] sm:$0xff] %v583
        %600 = vst [vmem:[#allocation3 + $0x30] sm:$0xff] %v584
        %601 = vst [vmem:[#allocation3 + $0x38] sm:$0xff] %v585
        %602 = vst [vmem:[#allocation3 + $0x40] sm:$0xff] %v586
        %603 = vst [vmem:[#allocation3 + $0x48] sm:$0xff] %v587
        %604 = vst [vmem:[#allocation3 + $0x50] sm:$0xff] %v588
        %605 = vst [vmem:[#allocation3 + $0x58] sm:$0xff] %v589
        %606 = vst [vmem:[#allocation3 + $0x60] sm:$0xff] %v590
        %607 = vst [vmem:[#allocation3 + $0x68] sm:$0xff] %v591
        %608 = vst [vmem:[#allocation3 + $0x70] sm:$0xff] %v592
        %609 = vst [vmem:[#allocation3 + $0x78] sm:$0xff] %v593
        %p610 = scmp.eq.s32.totalorder %s21, 1
        // Predicated region
        $region79: #{residual_ff.5} parent=69 // pred_check
          %p611 = pneg %p610
        $region80: #{residual_ff.5} parent=69 // pred_check_branch
          %613 = sbr.rel (%p611) target = $region82
        $region81: #{residual_ff.5} parent=69 // pred_region
          %v614 = vld [vmem:[#allocation3] sm:$0xff]
          %v615 = vld [vmem:[#allocation3 + $0x8] sm:$0xff]
          %v616 = vld [vmem:[#allocation3 + $0x10] sm:$0xff]
          %v617 = vld [vmem:[#allocation3 + $0x18] sm:$0xff]
          %v618 = vld [vmem:[#allocation3 + $0x20] sm:$0xff]
          %v619 = vld [vmem:[#allocation3 + $0x28] sm:$0xff]
          %v620 = vld [vmem:[#allocation3 + $0x30] sm:$0xff]
          %v621 = vld [vmem:[#allocation3 + $0x38] sm:$0xff]
          %v622 = vld [vmem:[#allocation3 + $0x40] sm:$0xff]
          %v623 = vld [vmem:[#allocation3 + $0x48] sm:$0xff]
          %v624 = vld [vmem:[#allocation3 + $0x50] sm:$0xff]
          %v625 = vld [vmem:[#allocation3 + $0x58] sm:$0xff]
          %v626 = vld [vmem:[#allocation3 + $0x60] sm:$0xff]
          %v627 = vld [vmem:[#allocation3 + $0x68] sm:$0xff]
          %v628 = vld [vmem:[#allocation3 + $0x70] sm:$0xff]
          %v629 = vld [vmem:[#allocation3 + $0x78] sm:$0xff]
          %v630 = vadd.f32 %v614, %v615
          %v631 = vadd.f32 %v630, %v616
          %v632 = vadd.f32 %v631, %v617
          %v633 = vadd.f32 %v632, %v618
          %v634 = vadd.f32 %v633, %v619
          %v635 = vadd.f32 %v634, %v620
          %v636 = vadd.f32 %v635, %v621
          %v637 = vadd.f32 %v636, %v622
          %v638 = vadd.f32 %v637, %v623
          %v639 = vadd.f32 %v638, %v624
          %v640 = vadd.f32 %v639, %v625
          %v641 = vadd.f32 %v640, %v626
          %v642 = vadd.f32 %v641, %v627
          %v643 = vadd.f32 %v642, %v628
          %v644 = vadd.f32 %v643, %v629
          %v645 = vrot.slane %v644, 4
          %v646 = vadd.f32 %v644, %v645
          %v647 = vrot.slane %v646, 2
          %v648 = vadd.f32 %v646, %v647
          %v649 = vrot.slane %v648, 1
          %v650 = vadd.f32 %v648, %v649
          %v651 = vrcp.pop 128.0
          %v652 = vmul.f32 %v650, %v651
          %v653 = vsub.f32 %v614, %v652
          %v654 = vsub.f32 %v615, %v652
          %v655 = vsub.f32 %v616, %v652
          %v656 = vsub.f32 %v617, %v652
          %v657 = vsub.f32 %v618, %v652
          %v658 = vsub.f32 %v619, %v652
          %v659 = vsub.f32 %v620, %v652
          %v660 = vsub.f32 %v621, %v652
          %v661 = vsub.f32 %v622, %v652
          %v662 = vsub.f32 %v623, %v652
          %v663 = vsub.f32 %v624, %v652
          %v664 = vsub.f32 %v625, %v652
          %v665 = vsub.f32 %v626, %v652
          %v666 = vsub.f32 %v627, %v652
          %v667 = vsub.f32 %v628, %v652
          %v668 = vsub.f32 %v629, %v652
          %v669 = vmul.f32 %v653, %v653
          %v670 = vmul.f32 %v654, %v654
          %v671 = vmul.f32 %v655, %v655
          %v672 = vmul.f32 %v656, %v656
          %v673 = vmul.f32 %v657, %v657
          %v674 = vmul.f32 %v658, %v658
          %v675 = vmul.f32 %v659, %v659
          %v676 = vmul.f32 %v660, %v660
          %v677 = vmul.f32 %v661, %v661
          %v678 = vmul.f32 %v662, %v662
          %v679 = vmul.f32 %v663, %v663
          %v680 = vmul.f32 %v664, %v664
          %v681 = vmul.f32 %v665, %v665
          %v682 = vmul.f32 %v666, %v666
          %v683 = vmul.f32 %v667, %v667
          %v684 = vmul.f32 %v668, %v668
          %v685 = vadd.f32 %v669, %v670
          %v686 = vadd.f32 %v685, %v671
          %v687 = vadd.f32 %v686, %v672
          %v688 = vadd.f32 %v687, %v673
          %v689 = vadd.f32 %v688, %v674
          %v690 = vadd.f32 %v689, %v675
          %v691 = vadd.f32 %v690, %v676
          %v692 = vadd.f32 %v691, %v677
          %v693 = vadd.f32 %v692, %v678
          %v694 = vadd.f32 %v693, %v679
          %v695 = vadd.f32 %v694, %v680
          %v696 = vadd.f32 %v695, %v681
          %v697 = vadd.f32 %v696, %v682
          %v698 = vadd.f32 %v697, %v683
          %v699 = vadd.f32 %v698, %v684
          %v700 = vrot.slane %v699, 4
          %v701 = vadd.f32 %v699, %v700
          %v702 = vrot.slane %v701, 2
          %v703 = vadd.f32 %v701, %v702
          %v704 = vrot.slane %v703, 1
          %v705 = vadd.f32 %v703, %v704
          %v706 = vmul.f32 %v705, %v651
          %v707 = vadd.f32 %v706, 1e-05
          %v708 = vrsqrt.pop %v707
          %v709 = vmul.f32 %v653, %v708
          %v710 = vmul.f32 %v654, %v708
          %v711 = vmul.f32 %v655, %v708
          %v712 = vmul.f32 %v656, %v708
          %v713 = vmul.f32 %v657, %v708
          %v714 = vmul.f32 %v658, %v708
          %v715 = vmul.f32 %v659, %v708
          %v716 = vmul.f32 %v660, %v708
          %v717 = vmul.f32 %v661, %v708
          %v718 = vmul.f32 %v662, %v708
          %v719 = vmul.f32 %v663, %v708
          %v720 = vmul.f32 %v664, %v708
          %v721 = vmul.f32 %v665, %v708
          %v722 = vmul.f32 %v666, %v708
          %v723 = vmul.f32 %v667, %v708
          %v724 = vmul.f32 %v668, %v708
          %v725 = vld [vmem:[%s352] sm:$0x1]
          %v727 = vlaneseq
          %v728 = vshrl.u32 %v727, 7
          %v729 = vsub.s32 0, %v728
          %v730 = vrot.slane %v725, %v729
          %v732 = vmul.f32 %v709, %v730
          %v733 = vmul.f32 %v710, %v730
          %v734 = vmul.f32 %v711, %v730
          %v735 = vmul.f32 %v712, %v730
          %v736 = vmul.f32 %v713, %v730
          %v737 = vmul.f32 %v714, %v730
          %v738 = vmul.f32 %v715, %v730
          %v739 = vmul.f32 %v716, %v730
          %v740 = vmul.f32 %v717, %v730
          %v741 = vmul.f32 %v718, %v730
          %v742 = vmul.f32 %v719, %v730
          %v743 = vmul.f32 %v720, %v730
          %v744 = vmul.f32 %v721, %v730
          %v745 = vmul.f32 %v722, %v730
          %v746 = vmul.f32 %v723, %v730
          %v747 = vmul.f32 %v724, %v730
          %v748 = vld [vmem:[%s355] sm:$0x1]
          %v750 = vlaneseq
          %v751 = vshrl.u32 %v750, 7
          %v752 = vsub.s32 0, %v751
          %v753 = vrot.slane %v748, %v752
          %v755 = vadd.f32 %v732, %v753
          %v756 = vadd.f32 %v733, %v753
          %v757 = vadd.f32 %v734, %v753
          %v758 = vadd.f32 %v735, %v753
          %v759 = vadd.f32 %v736, %v753
          %v760 = vadd.f32 %v737, %v753
          %v761 = vadd.f32 %v738, %v753
          %v762 = vadd.f32 %v739, %v753
          %v763 = vadd.f32 %v740, %v753
          %v764 = vadd.f32 %v741, %v753
          %v765 = vadd.f32 %v742, %v753
          %v766 = vadd.f32 %v743, %v753
          %v767 = vadd.f32 %v744, %v753
          %v768 = vadd.f32 %v745, %v753
          %v769 = vadd.f32 %v746, %v753
          %v770 = vadd.f32 %v747, %v753
          %v771 = vtanh.pop %v755
          %v772 = vtanh.pop %v756
          %v773 = vtanh.pop %v757
          %v774 = vtanh.pop %v758
          %v775 = vtanh.pop %v759
          %v776 = vtanh.pop %v760
          %v777 = vtanh.pop %v761
          %v778 = vtanh.pop %v762
          %v779 = vtanh.pop %v763
          %v780 = vtanh.pop %v764
          %v781 = vtanh.pop %v765
          %v782 = vtanh.pop %v766
          %v783 = vtanh.pop %v767
          %v784 = vtanh.pop %v768
          %v785 = vtanh.pop %v769
          %v786 = vtanh.pop %v770
          %787 = vst [vmem:[#allocation3] sm:$0xff] %v771
          %788 = vst [vmem:[#allocation3 + $0x8] sm:$0xff] %v772
          %789 = vst [vmem:[#allocation3 + $0x10] sm:$0xff] %v773
          %790 = vst [vmem:[#allocation3 + $0x18] sm:$0xff] %v774
          %791 = vst [vmem:[#allocation3 + $0x20] sm:$0xff] %v775
          %792 = vst [vmem:[#allocation3 + $0x28] sm:$0xff] %v776
          %793 = vst [vmem:[#allocation3 + $0x30] sm:$0xff] %v777
          %794 = vst [vmem:[#allocation3 + $0x38] sm:$0xff] %v778
          %795 = vst [vmem:[#allocation3 + $0x40] sm:$0xff] %v779
          %796 = vst [vmem:[#allocation3 + $0x48] sm:$0xff] %v780
          %797 = vst [vmem:[#allocation3 + $0x50] sm:$0xff] %v781
          %798 = vst [vmem:[#allocation3 + $0x58] sm:$0xff] %v782
          %799 = vst [vmem:[#allocation3 + $0x60] sm:$0xff] %v783
          %800 = vst [vmem:[#allocation3 + $0x68] sm:$0xff] %v784
          %801 = vst [vmem:[#allocation3 + $0x70] sm:$0xff] %v785
          %802 = vst [vmem:[#allocation3 + $0x78] sm:$0xff] %v786
        $region82: #{residual_ff.5} parent=69 // pred_fallthru
          _
        // Predicated region
        $region83: #{residual_ff.5} parent=69 // pred_check
          %p803 = pneg %p152
        $region84: #{residual_ff.5} parent=69 // pred_check_branch
          %805 = sbr.rel (%p803) target = $region86
        $region85: #{residual_ff.5} parent=69 // pred_region
          %s807 = ssub.s32 2048, 2048
          %808 = vsyncadd [#allocation4], %s807
          %s809 = smul.addr %s20, 128
          %s810 = scalar_lea.hbm %s4, %s809
          %s811 = sshll.u32 [#allocation3], 4
          %s812 = int_to_ptr.vmem [resolvable:$true] %s811
          %817 = dma.vmem_to_hbm [thread:$0]  %s812, 2048, %s810, [#allocation4], 128, 128, 8
        $region86: #{residual_ff.5} parent=69 // pred_fallthru
          _
        // Predicated region
        $region87: #{residual_ff.5} parent=69 // pred_check
          %p818 = pneg %p152
        $region88: #{residual_ff.5} parent=69 // pred_check_branch
          %820 = sbr.rel (%p818) target = $region90
        $region89: #{residual_ff.5} parent=69 // pred_region
          %821 = dma.done [#allocation4], 2048
        $region90: #{residual_ff.5} parent=69 // pred_fallthru
          _
      $region70: #{residual_ff.5} parent=5 // pred_fallthru
        _
      %p822 = scmp.le.s32.totalorder 2, %s11
      // Predicated region
      $region91: #{residual_ff.5} parent=5 // pred_check
        %p823 = pneg %p822
      $region92: #{residual_ff.5} parent=5 // pred_check_branch
        %825 = sbr.rel (%p823) target = $region94
      $region93: #{residual_ff.5} parent=5 // pred_region
        %s826 = ssub.s32 %s11, 2
      $region94: #{residual_ff.5} parent=5 // pred_fallthru
        _
    $region6: #{residual_ff.5} parent=1 // loop_footer
      %s15 = sadd.s32 1, %s11
    $region7: #{residual_ff.5} parent=1 // loop_footer_branch
      %10 = sbr.rel target = $region3
    $region8: #{residual_ff.5} parent=1 // loop_exit
      _
    %827 = vsyncpa [#allocation4], 1
    %s828 = scalar_lea.sflag [#allocation4], 1
    %829 = vsyncpa %s828, 1

// kernel: residual_ff.3
$region0: #{residual_ff.3}
  #allocation0 [shape = 'u32[]', space=smem, size = 0x4, offset = 0x4, fixed_abs, tag = 'smem constant byte address 0x4 - core index']
  #allocation1 [shape = 'u32[144,128]{1,0:T(1,128)}', space=vmem, size = 0x12000, scoped, tag = 'internal scratch']
  %s0 = inlined_call_operand.vmem [shape: f32[128,256], index: 0, kind: input, shape index: {}, may-alias: {0,4}]
  %s1 = inlined_call_operand.vmem [shape: bf16[256,256], index: 1, kind: input, shape index: {}]
  %s2 = inlined_call_operand.vmem [shape: f32[1,256], index: 2, kind: input, shape index: {}]
  %s3 = inlined_call_operand.vmem [shape: f32[1,256], index: 3, kind: input, shape index: {}]
  %s4 = inlined_call_operand.vmem [shape: f32[128,256], index: 4, kind: input, shape index: {}, may-alias: {0,4}]
  %s5 = inlined_call_operand.vmem [shape: f32[128,256], index: 5, kind: output, shape index: {}]
  %s6 = sld [smem:[#allocation0]]
  $region212: #{residual_ff.3} parent=0
    _
  %s8 = ssub.s32 1, %s6
  %s9 = scalar_select 0, %s8, %s6
  $region1: #{residual_ff.3} parent=0
    #allocation2 [shape = 'u8[131072]{0}', space=vmem, size = 0x20000, scoped, tag = 'input window, operand 0']
    #allocation3 [shape = 'u8[65536]{0}', space=vmem, size = 0x10000, scoped, tag = 'input window, operand 1']
    #allocation4 [shape = 'u8[131072]{0}', space=vmem, size = 0x20000, scoped, tag = 'input window, operand 4']
    #allocation5 [shape = 'u8[131072]{0}', space=vmem, size = 0x20000, scoped, tag = 'output window, operand 0']
    loop: start=0, step=1, limit=6
    $region2: #{residual_ff.3} parent=1 // loop_pre_header
      _
    $region3: #{residual_ff.3} parent=1 // loop_header
      %s11 = sphi 0, %s15
      %p12 = scmp.ge.s32.totalorder %s11, 6
      %s18 = sphi 0, %s30
      %s19 = sphi 0, %s26
      %s20 = sphi 0, %s18
      %s21 = sphi 0, %s19
      %s22 = sphi 0, %s20
      %s23 = sphi 0, %s21
      %s33 = sphi 0, %s35
      %s36 = sphi 0, %s33
      %s37 = sphi 0, %s36
      %s53 = sphi 0, %s37
      %s61 = sphi 0, %s63
      %s64 = sphi 0, %s61
      %s65 = sphi 0, %s64
      %s81 = sphi 0, %s65
      %s87 = sphi 0, %s89
      %s90 = sphi 0, %s87
      %s91 = sphi 0, %s90
      %s107 = sphi 0, %s91
      %s113 = sphi 0, %s115
      %s116 = sphi 0, %s113
      %s117 = sphi 0, %s116
      %s133 = sphi 0, %s117
      %s139 = sphi 0, %s141
      %s142 = sphi 0, %s139
      %s143 = sphi 0, %s142
      %s159 = sphi 0, %s143
      %s165 = sphi 0, %s167
      %s168 = sphi 0, %s165
      %s169 = sphi 0, %s168
      %s185 = sphi 0, %s169
    $region4: #{residual_ff.3} parent=1 // loop_header_branch
      %14 = sbr.rel (%p12) target = $region8
    $region5: #{residual_ff.3} parent=1 // loop_body
      %s16 = ssub.s32 %s11, 1
      %s17 = ssub.s32 %s11, 2
      %s24 = sadd.s32 1, %s19
      %p25 = scmp.ge.s32.totalorder %s24, 2
      %s26 = scalar_select %p25, 0, %s24
      %s27 = sadd.s32 1, %s18
      %s28 = scalar_select %p25, %s27, %s18
      %p29 = scmp.ge.s32.totalorder %s28, 2
      %s30 = scalar_select %p29, 0, %s28
      %s31 = ssub.s32 %s19, %s26
      %p32 = scmp.eq.s32.totalorder %s31, 0
      %s34 = sadd.s32 %s33, 1
      %s35 = scalar_select %p32, %s33, %s34
      %p38 = pneg %p32
      %p39 = scmp.eq.s32.totalorder %s11, 3
      %p40 = por %p38, %p39
      %p41 = scmp.ne.s32.totalorder %s33, %s36
      %p42 = scmp.eq.s32.totalorder %s11, 0
      %p43 = por %p41, %p42
      %p44 = scmp.ne.s32.totalorder %s33, %s36
      %p45 = scmp.eq.s32.totalorder %s16, 3
      %p46 = por %p44, %p45
      %p47 = scmp.ne.s32.totalorder %s36, %s37
      %p48 = scmp.eq.s32.totalorder %s16, 0
      %p49 = por %p47, %p48
      %p50 = scmp.ne.s32.totalorder %s36, %s37
      %p51 = scmp.eq.s32.totalorder %s17, 3
      %p52 = por %p50, %p51
      %p54 = scmp.ne.s32.totalorder %s37, %s53
      %p55 = scmp.eq.s32.totalorder %s17, 0
      %p56 = por %p54, %p55
      %s57 = ssub.s32 %s19, %s26
      %s58 = ssub.s32 %s18, %s30
      %s59 = sor.u32 %s57, %s58
      %p60 = scmp.eq.s32.totalorder %s59, 0
      %s62 = sadd.s32 %s61, 1
      %s63 = scalar_select %p60, %s61, %s62
      %p66 = pneg %p60
      %p67 = scmp.eq.s32.totalorder %s11, 3
      %p68 = por %p66, %p67
      %p69 = scmp.ne.s32.totalorder %s61, %s64
      %p70 = scmp.eq.s32.totalorder %s11, 0
      %p71 = por %p69, %p70
      %p72 = scmp.ne.s32.totalorder %s61, %s64
      %p73 = scmp.eq.s32.totalorder %s16, 3
      %p74 = por %p72, %p73
      %p75 = scmp.ne.s32.totalorder %s64, %s65
      %p76 = scmp.eq.s32.totalorder %s16, 0
      %p77 = por %p75, %p76
      %p78 = scmp.ne.s32.totalorder %s64, %s65
      %p79 = scmp.eq.s32.totalorder %s17, 3
      %p80 = por %p78, %p79
      %p82 = scmp.ne.s32.totalorder %s65, %s81
      %p83 = scmp.eq.s32.totalorder %s17, 0
      %p84 = por %p82, %p83
      %s85 = ssub.s32 %s18, %s30
      %p86 = scmp.eq.s32.totalorder %s85, 0
      %s88 = sadd.s32 %s87, 1
      %s89 = scalar_select %p86, %s87, %s88
      %p92 = pneg %p86
      %p93 = scmp.eq.s32.totalorder %s11, 3
      %p94 = por %p92, %p93
      %p95 = scmp.ne.s32.totalorder %s87, %s90
      %p96 = scmp.eq.s32.totalorder %s11, 0
      %p97 = por %p95, %p96
      %p98 = scmp.ne.s32.totalorder %s87, %s90
      %p99 = scmp.eq.s32.totalorder %s16, 3
      %p100 = por %p98, %p99
      %p101 = scmp.ne.s32.totalorder %s90, %s91
      %p102 = scmp.eq.s32.totalorder %s16, 0
      %p103 = por %p101, %p102
      %p104 = scmp.ne.s32.totalorder %s90, %s91
      %p105 = scmp.eq.s32.totalorder %s17, 3
      %p106 = por %p104, %p105
      %p108 = scmp.ne.s32.totalorder %s91, %s107
      %p109 = scmp.eq.s32.totalorder %s17, 0
      %p110 = por %p108, %p109
      %s111 = ssub.s32 %s18, %s30
      %p112 = scmp.eq.s32.totalorder %s111, 0
      %s114 = sadd.s32 %s113, 1
      %s115 = scalar_select %p112, %s113, %s114
      %p118 = pneg %p112
      %p119 = scmp.eq.s32.totalorder %s11, 3
      %p120 = por %p118, %p119
      %p121 = scmp.ne.s32.totalorder %s113, %s116
      %p122 = scmp.eq.s32.totalorder %s11, 0
      %p123 = por %p121, %p122
      %p124 = scmp.ne.s32.totalorder %s113, %s116
      %p125 = scmp.eq.s32.totalorder %s16, 3
      %p126 = por %p124, %p125
      %p127 = scmp.ne.s32.totalorder %s116, %s117
      %p128 = scmp.eq.s32.totalorder %s16, 0
      %p129 = por %p127, %p128
      %p130 = scmp.ne.s32.totalorder %s116, %s117
      %p131 = scmp.eq.s32.totalorder %s17, 3
      %p132 = por %p130, %p131
      %p134 = scmp.ne.s32.totalorder %s117, %s133
      %p135 = scmp.eq.s32.totalorder %s17, 0
      %p136 = por %p134, %p135
      %s137 = ssub.s32 %s18, %s30
      %p138 = scmp.eq.s32.totalorder %s137, 0
      %s140 = sadd.s32 %s139, 1
      %s141 = scalar_select %p138, %s139, %s140
      %p144 = pneg %p138
      %p145 = scmp.eq.s32.totalorder %s11, 3
      %p146 = por %p144, %p145
      %p147 = scmp.ne.s32.totalorder %s139, %s142
      %p148 = scmp.eq.s32.totalorder %s11, 0
      %p149 = por %p147, %p148
      %p150 = scmp.ne.s32.totalorder %s139, %s142
      %p151 = scmp.eq.s32.totalorder %s16, 3
      %p152 = por %p150, %p151
      %p153 = scmp.ne.s32.totalorder %s142, %s143
      %p154 = scmp.eq.s32.totalorder %s16, 0
      %p155 = por %p153, %p154
      %p156 = scmp.ne.s32.totalorder %s142, %s143
      %p157 = scmp.eq.s32.totalorder %s17, 3
      %p158 = por %p156, %p157
      %p160 = scmp.ne.s32.totalorder %s143, %s159
      %p161 = scmp.eq.s32.totalorder %s17, 0
      %p162 = por %p160, %p161
      %s163 = ssub.s32 %s18, %s30
      %p164 = scmp.eq.s32.totalorder %s163, 0
      %s166 = sadd.s32 %s165, 1
      %s167 = scalar_select %p164, %s165, %s166
      %p170 = pneg %p164
      %p171 = scmp.eq.s32.totalorder %s11, 3
      %p172 = por %p170, %p171
      %p173 = scmp.ne.s32.totalorder %s165, %s168
      %p174 = scmp.eq.s32.totalorder %s11, 0
      %p175 = por %p173, %p174
      %p176 = scmp.ne.s32.totalorder %s165, %s168
      %p177 = scmp.eq.s32.totalorder %s16, 3
      %p178 = por %p176, %p177
      %p179 = scmp.ne.s32.totalorder %s168, %s169
      %p180 = scmp.eq.s32.totalorder %s16, 0
      %p181 = por %p179, %p180
      %p182 = scmp.ne.s32.totalorder %s168, %s169
      %p183 = scmp.eq.s32.totalorder %s17, 3
      %p184 = por %p182, %p183
      %p186 = scmp.ne.s32.totalorder %s169, %s185
      %p187 = scmp.eq.s32.totalorder %s17, 0
      %p188 = por %p186, %p187
      %p189 = scmp.le.s32.totalorder 1, %s11
      %p190 = scmp.lt.s32.totalorder %s11, 5
      %p191 = pnand %p189, %p190
      %p192 = pneg %p191
      // Predicated region
      $region9: #{residual_ff.3} parent=5 // pred_check
        _
      $region10: #{residual_ff.3} parent=5 // pred_check_branch
        %194 = sbr.rel (%p191) target = $region12
      $region11: #{residual_ff.3} parent=5 // pred_region
        %s195 = ssub.s32 %s11, 1
      $region12: #{residual_ff.3} parent=5 // pred_fallthru
        _
      %p196 = scmp.lt.s32.totalorder %s11, 4
      // Predicated region
      $region13: #{residual_ff.3} parent=5 // pred_check
        %p197 = pneg %p196
      $region14: #{residual_ff.3} parent=5 // pred_check_branch
        %199 = sbr.rel (%p197) target = $region16
      $region15: #{residual_ff.3} parent=5 // pred_region
        // Predicated region
        $region17: #{residual_ff.3} parent=15 // pred_check
          %p200 = pneg %p43
        $region18: #{residual_ff.3} parent=15 // pred_check_branch
          %202 = sbr.rel (%p200) target = $region20
        $region19: #{residual_ff.3} parent=15 // pred_region
          %s203 = sand.u32 %s33, 1
          %s204 = sand.u32 %s33, 1
          %s205 = smul.addr %s204, 128
          %s206 = scalar_lea.vmem [#allocation2], %s205
          %s207 = smul.addr %s19, 8
          %s208 = scalar_lea.vmem %s0, %s207
          // Predicated region
          $region21: #{residual_ff.3} parent=19 // pred_check
            _
          $region22: #{residual_ff.3} parent=19 // pred_check_branch
            %210 = sbr.rel (0) target = $region24
          $region23: #{residual_ff.3} parent=19 // pred_region
            // Predicated region
            $region25: #{residual_ff.3} parent=23 // pred_check
              _
            $region26: #{residual_ff.3} parent=23 // pred_check_branch
              %212 = sbr.rel (0) target = $region28
            $region27: #{residual_ff.3} parent=23 // pred_region
              // Predicated region
              $region40: #{residual_ff.3} parent=27 // pred_check
                _
              $region41: #{residual_ff.3} parent=27 // pred_check_branch
                %257 = sbr.rel (0) target = $region43
              $region42: #{residual_ff.3} parent=27 // pred_region
                loop: start=0, step=1, limit=1
                $region44: #{residual_ff.3} parent=42 // loop_pre_header
                  _
                $region45: #{residual_ff.3} parent=42 // loop_header
                  %s259 = sphi 0, %s263
                  %p260 = scmp.ge.s32.totalorder %s259, 1
                  %s264 = sphi %s208, %s208
                  %s265 = sphi %s206, %s206
                $region46: #{residual_ff.3} parent=42 // loop_header_branch
                  %262 = sbr.rel (%p260) target = $region50
                $region47: #{residual_ff.3} parent=42 // loop_body
                  %v266 = vld [vmem:[%s264] sm:$0xff]
                  %267 = vst [vmem:[%s265] sm:$0xff] %v266
                  %v268 = vld [vmem:[%s264 + $0x10] sm:$0xff]
                  %269 = vst [vmem:[%s265 + $0x8] sm:$0xff] %v268
                  %v270 = vld [vmem:[%s264 + $0x20] sm:$0xff]
                  %271 = vst [vmem:[%s265 + $0x10] sm:$0xff] %v270
                  %v272 = vld [vmem:[%s264 + $0x30] sm:$0xff]
                  %273 = vst [vmem:[%s265 + $0x18] sm:$0xff] %v272
                  %v274 = vld [vmem:[%s264 + $0x40] sm:$0xff]
                  %275 = vst [vmem:[%s265 + $0x20] sm:$0xff] %v274
                  %v276 = vld [vmem:[%s264 + $0x50] sm:$0xff]
                  %277 = vst [vmem:[%s265 + $0x28] sm:$0xff] %v276
                  %v278 = vld [vmem:[%s264 + $0x60] sm:$0xff]
                  %279 = vst [vmem:[%s265 + $0x30] sm:$0xff] %v278
                  %v280 = vld [vmem:[%s264 + $0x70] sm:$0xff]
                  %281 = vst [vmem:[%s265 + $0x38] sm:$0xff] %v280
                  %v282 = vld [vmem:[%s264 + $0x80] sm:$0xff]
                  %283 = vst [vmem:[%s265 + $0x40] sm:$0xff] %v282
                  %v284 = vld [vmem:[%s264 + $0x90] sm:$0xff]
                  %285 = vst [vmem:[%s265 + $0x48] sm:$0xff] %v284
                  %v286 = vld [vmem:[%s264 + $0xa0] sm:$0xff]
                  %287 = vst [vmem:[%s265 + $0x50] sm:$0xff] %v286
                  %v288 = vld [vmem:[%s264 + $0xb0] sm:$0xff]
                  %289 = vst [vmem:[%s265 + $0x58] sm:$0xff] %v288
                  %v290 = vld [vmem:[%s264 + $0xc0] sm:$0xff]
                  %291 = vst [vmem:[%s265 + $0x60] sm:$0xff] %v290
                  %v292 = vld [vmem:[%s264 + $0xd0] sm:$0xff]
                  %293 = vst [vmem:[%s265 + $0x68] sm:$0xff] %v292
                  %v294 = vld [vmem:[%s264 + $0xe0] sm:$0xff]
                  %295 = vst [vmem:[%s265 + $0x70] sm:$0xff] %v294
                  %v296 = vld [vmem:[%s264 + $0xf0] sm:$0xff]
                  %297 = vst [vmem:[%s265 + $0x78] sm:$0xff] %v296
                $region48: #{residual_ff.3} parent=42 // loop_footer
                  %s263 = sadd.s32 1, %s259
                $region49: #{residual_ff.3} parent=42 // loop_footer_branch
                  %258 = sbr.rel target = $region45
                $region50: #{residual_ff.3} parent=42 // loop_exit
                  _
              $region43: #{residual_ff.3} parent=27 // pred_fallthru
                _
              // Predicated region
              $region51: #{residual_ff.3} parent=27 // pred_check
                _
              $region52: #{residual_ff.3} parent=27 // pred_check_branch
                %299 = sbr.rel target = $region54
              $region53: #{residual_ff.3} parent=27 // pred_region
                _
              $region54: #{residual_ff.3} parent=27 // pred_fallthru
                _
            $region28: #{residual_ff.3} parent=23 // pred_fallthru
              _
            // Predicated region
            $region29: #{residual_ff.3} parent=23 // pred_check
              _
            $region30: #{residual_ff.3} parent=23 // pred_check_branch
              %214 = sbr.rel target = $region32
            $region31: #{residual_ff.3} parent=23 // pred_region
              loop: start=0, step=1, limit=1
              $region33: #{residual_ff.3} parent=31 // loop_pre_header
                _
              $region34: #{residual_ff.3} parent=31 // loop_header
                %s217 = sphi 0, %s221
                %p218 = scmp.ge.s32.totalorder %s217, 1
                %s222 = sphi %s208, %s208
                %s223 = sphi %s206, %s206
              $region35: #{residual_ff.3} parent=31 // loop_header_branch
                %220 = sbr.rel (%p218) target = $region39
              $region36: #{residual_ff.3} parent=31 // loop_body
                %v224 = vld [vmem:[%s222] sm:$0xff]
                %225 = vst [vmem:[%s223] sm:$0xff] %v224
                %v226 = vld [vmem:[%s222 + $0x10] sm:$0xff]
                %227 = vst [vmem:[%s223 + $0x8] sm:$0xff] %v226
                %v228 = vld [vmem:[%s222 + $0x20] sm:$0xff]
                %229 = vst [vmem:[%s223 + $0x10] sm:$0xff] %v228
                %v230 = vld [vmem:[%s222 + $0x30] sm:$0xff]
                %231 = vst [vmem:[%s223 + $0x18] sm:$0xff] %v230
                %v232 = vld [vmem:[%s222 + $0x40] sm:$0xff]
                %233 = vst [vmem:[%s223 + $0x20] sm:$0xff] %v232
                %v234 = vld [vmem:[%s222 + $0x50] sm:$0xff]
                %235 = vst [vmem:[%s223 + $0x28] sm:$0xff] %v234
                %v236 = vld [vmem:[%s222 + $0x60] sm:$0xff]
                %237 = vst [vmem:[%s223 + $0x30] sm:$0xff] %v236
                %v238 = vld [vmem:[%s222 + $0x70] sm:$0xff]
                %239 = vst [vmem:[%s223 + $0x38] sm:$0xff] %v238
                %v240 = vld [vmem:[%s222 + $0x80] sm:$0xff]
                %241 = vst [vmem:[%s223 + $0x40] sm:$0xff] %v240
                %v242 = vld [vmem:[%s222 + $0x90] sm:$0xff]
                %243 = vst [vmem:[%s223 + $0x48] sm:$0xff] %v242
                %v244 = vld [vmem:[%s222 + $0xa0] sm:$0xff]
                %245 = vst [vmem:[%s223 + $0x50] sm:$0xff] %v244
                %v246 = vld [vmem:[%s222 + $0xb0] sm:$0xff]
                %247 = vst [vmem:[%s223 + $0x58] sm:$0xff] %v246
                %v248 = vld [vmem:[%s222 + $0xc0] sm:$0xff]
                %249 = vst [vmem:[%s223 + $0x60] sm:$0xff] %v248
                %v250 = vld [vmem:[%s222 + $0xd0] sm:$0xff]
                %251 = vst [vmem:[%s223 + $0x68] sm:$0xff] %v250
                %v252 = vld [vmem:[%s222 + $0xe0] sm:$0xff]
                %253 = vst [vmem:[%s223 + $0x70] sm:$0xff] %v252
                %v254 = vld [vmem:[%s222 + $0xf0] sm:$0xff]
                %255 = vst [vmem:[%s223 + $0x78] sm:$0xff] %v254
              $region37: #{residual_ff.3} parent=31 // loop_footer
                %s221 = sadd.s32 1, %s217
              $region38: #{residual_ff.3} parent=31 // loop_footer_branch
                %216 = sbr.rel target = $region34
              $region39: #{residual_ff.3} parent=31 // loop_exit
                _
            $region32: #{residual_ff.3} parent=23 // pred_fallthru
              _
          $region24: #{residual_ff.3} parent=19 // pred_fallthru
            _
          %300 = vnop
        $region20: #{residual_ff.3} parent=15 // pred_fallthru
          _
        // Predicated region
        $region55: #{residual_ff.3} parent=15 // pred_check
          %p301 = pneg %p71
        $region56: #{residual_ff.3} parent=15 // pred_check_branch
          %303 = sbr.rel (%p301) target = $region58
        $region57: #{residual_ff.3} parent=15 // pred_region
          %s304 = sand.u32 %s61, 1
          %s305 = sand.u32 %s61, 1
          %s306 = smul.addr %s305, 64
          %s307 = scalar_lea.vmem [#allocation3], %s306
          %s308 = smul.u32 16, %s19
          %s309 = smul.addr %s308, 2
          %s310 = sadd.s32 %s18, %s309
          %s311 = smul.addr %s310, 4
          %s312 = scalar_lea.vmem %s1, %s311
          // Predicated region
          $region59: #{residual_ff.3} parent=57 // pred_check
            _
          $region60: #{residual_ff.3} parent=57 // pred_check_branch
            %314 = sbr.rel (0) target = $region62
          $region61: #{residual_ff.3} parent=57 // pred_region
            // Predicated region
            $region63: #{residual_ff.3} parent=61 // pred_check
              _
            $region64: #{residual_ff.3} parent=61 // pred_check_branch
              %316 = sbr.rel target = $region66
            $region65: #{residual_ff.3} parent=61 // pred_region
              // Predicated region
              $region78: #{residual_ff.3} parent=65 // pred_check
                _
              $region79: #{residual_ff.3} parent=65 // pred_check_branch
                %361 = sbr.rel (0) target = $region81
              $region80: #{residual_ff.3} parent=65 // pred_region
                loop: start=0, step=1, limit=1
                $region82: #{residual_ff.3} parent=80 // loop_pre_header
                  _
                $region83: #{residual_ff.3} parent=80 // loop_header
                  %s363 = sphi 0, %s367
                  %p364 = scmp.ge.s32.totalorder %s363, 1
                  %s368 = sphi %s312, %s312
                  %s369 = sphi %s307, %s307
                $region84: #{residual_ff.3} parent=80 // loop_header_branch
                  %366 = sbr.rel (%p364) target = $region88
                $region85: #{residual_ff.3} parent=80 // loop_body
                  _
                $region86: #{residual_ff.3} parent=80 // loop_footer
                  %s367 = sadd.s32 1, %s363
                $region87: #{residual_ff.3} parent=80 // loop_footer_branch
                  %362 = sbr.rel target = $region83
                $region88: #{residual_ff.3} parent=80 // loop_exit
                  _
                loop: start=0, step=1, limit=1
                $region89: #{residual_ff.3} parent=80 // loop_pre_header
                  _
                $region90: #{residual_ff.3} parent=80 // loop_header
                  %s372 = sphi 0, %s376
                  %p373 = scmp.ge.s32.totalorder %s372, 1
                  %s377 = sphi %s312, %s312
                  %s378 = sphi %s307, %s307
                $region91: #{residual_ff.3} parent=80 // loop_header_branch
                  %375 = sbr.rel (%p373) target = $region95
                $region92: #{residual_ff.3} parent=80 // loop_body
                  %v379 = vld [vmem:[%s377] sm:$0xf]
                  %380 = vst [vmem:[%s378] sm:$0xf] %v379
                  %v381 = vld [vmem:[%s377 + $0x8] sm:$0xf]
                  %382 = vst [vmem:[%s378 + $0x4] sm:$0xf] %v381
                  %v383 = vld [vmem:[%s377 + $0x10] sm:$0xf]
                  %384 = vst [vmem:[%s378 + $0x8] sm:$0xf] %v383
                  %v385 = vld [vmem:[%s377 + $0x18] sm:$0xf]
                  %386 = vst [vmem:[%s378 + $0xc] sm:$0xf] %v385
                  %v387 = vld [vmem:[%s377 + $0x20] sm:$0xf]
                  %388 = vst [vmem:[%s378 + $0x10] sm:$0xf] %v387
                  %v389 = vld [vmem:[%s377 + $0x28] sm:$0xf]
                  %390 = vst [vmem:[%s378 + $0x14] sm:$0xf] %v389
                  %v391 = vld [vmem:[%s377 + $0x30] sm:$0xf]
                  %392 = vst [vmem:[%s378 + $0x18] sm:$0xf] %v391
                  %v393 = vld [vmem:[%s377 + $0x38] sm:$0xf]
                  %394 = vst [vmem:[%s378 + $0x1c] sm:$0xf] %v393
                  %v395 = vld [vmem:[%s377 + $0x40] sm:$0xf]
                  %396 = vst [vmem:[%s378 + $0x20] sm:$0xf] %v395
                  %v397 = vld [vmem:[%s377 + $0x48] sm:$0xf]
                  %398 = vst [vmem:[%s378 + $0x24] sm:$0xf] %v397
                  %v399 = vld [vmem:[%s377 + $0x50] sm:$0xf]
                  %400 = vst [vmem:[%s378 + $0x28] sm:$0xf] %v399
                  %v401 = vld [vmem:[%s377 + $0x58] sm:$0xf]
                  %402 = vst [vmem:[%s378 + $0x2c] sm:$0xf] %v401
                  %v403 = vld [vmem:[%s377 + $0x60] sm:$0xf]
                  %404 = vst [vmem:[%s378 + $0x30] sm:$0xf] %v403
                  %v405 = vld [vmem:[%s377 + $0x68] sm:$0xf]
                  %406 = vst [vmem:[%s378 + $0x34] sm:$0xf] %v405
                  %v407 = vld [vmem:[%s377 + $0x70] sm:$0xf]
                  %408 = vst [vmem:[%s378 + $0x38] sm:$0xf] %v407
                  %v409 = vld [vmem:[%s377 + $0x78] sm:$0xf]
                  %410 = vst [vmem:[%s378 + $0x3c] sm:$0xf] %v409
                $region93: #{residual_ff.3} parent=80 // loop_footer
                  %s376 = sadd.s32 1, %s372
                $region94: #{residual_ff.3} parent=80 // loop_footer_branch
                  %371 = sbr.rel target = $region90
                $region95: #{residual_ff.3} parent=80 // loop_exit
                  _
              $region81: #{residual_ff.3} parent=65 // pred_fallthru
                _
            $region66: #{residual_ff.3} parent=61 // pred_fallthru
              _
            // Predicated region
            $region67: #{residual_ff.3} parent=61 // pred_check
              _
            $region68: #{residual_ff.3} parent=61 // pred_check_branch
              %318 = sbr.rel (0) target = $region70
            $region69: #{residual_ff.3} parent=61 // pred_region
              loop: start=0, step=1, limit=1
              $region71: #{residual_ff.3} parent=69 // loop_pre_header
                _
              $region72: #{residual_ff.3} parent=69 // loop_header
                %s321 = sphi 0, %s325
                %p322 = scmp.ge.s32.totalorder %s321, 1
                %s326 = sphi %s312, %s312
                %s327 = sphi %s307, %s307
              $region73: #{residual_ff.3} parent=69 // loop_header_branch
                %324 = sbr.rel (%p322) target = $region77
              $region74: #{residual_ff.3} parent=69 // loop_body
                %v328 = vld [vmem:[%s326] sm:$0xf]
                %329 = vst [vmem:[%s327] sm:$0xf] %v328
                %v330 = vld [vmem:[%s326 + $0x8] sm:$0xf]
                %331 = vst [vmem:[%s327 + $0x4] sm:$0xf] %v330
                %v332 = vld [vmem:[%s326 + $0x10] sm:$0xf]
                %333 = vst [vmem:[%s327 + $0x8] sm:$0xf] %v332
                %v334 = vld [vmem:[%s326 + $0x18] sm:$0xf]
                %335 = vst [vmem:[%s327 + $0xc] sm:$0xf] %v334
                %v336 = vld [vmem:[%s326 + $0x20] sm:$0xf]
                %337 = vst [vmem:[%s327 + $0x10] sm:$0xf] %v336
                %v338 = vld [vmem:[%s326 + $0x28] sm:$0xf]
                %339 = vst [vmem:[%s327 + $0x14] sm:$0xf] %v338
                %v340 = vld [vmem:[%s326 + $0x30] sm:$0xf]
                %341 = vst [vmem:[%s327 + $0x18] sm:$0xf] %v340
                %v342 = vld [vmem:[%s326 + $0x38] sm:$0xf]
                %343 = vst [vmem:[%s327 + $0x1c] sm:$0xf] %v342
                %v344 = vld [vmem:[%s326 + $0x40] sm:$0xf]
                %345 = vst [vmem:[%s327 + $0x20] sm:$0xf] %v344
                %v346 = vld [vmem:[%s326 + $0x48] sm:$0xf]
                %347 = vst [vmem:[%s327 + $0x24] sm:$0xf] %v346
                %v348 = vld [vmem:[%s326 + $0x50] sm:$0xf]
                %349 = vst [vmem:[%s327 + $0x28] sm:$0xf] %v348
                %v350 = vld [vmem:[%s326 + $0x58] sm:$0xf]
                %351 = vst [vmem:[%s327 + $0x2c] sm:$0xf] %v350
                %v352 = vld [vmem:[%s326 + $0x60] sm:$0xf]
                %353 = vst [vmem:[%s327 + $0x30] sm:$0xf] %v352
                %v354 = vld [vmem:[%s326 + $0x68] sm:$0xf]
                %355 = vst [vmem:[%s327 + $0x34] sm:$0xf] %v354
                %v356 = vld [vmem:[%s326 + $0x70] sm:$0xf]
                %357 = vst [vmem:[%s327 + $0x38] sm:$0xf] %v356
                %v358 = vld [vmem:[%s326 + $0x78] sm:$0xf]
                %359 = vst [vmem:[%s327 + $0x3c] sm:$0xf] %v358
              $region75: #{residual_ff.3} parent=69 // loop_footer
                %s325 = sadd.s32 1, %s321
              $region76: #{residual_ff.3} parent=69 // loop_footer_branch
                %320 = sbr.rel target = $region72
              $region77: #{residual_ff.3} parent=69 // loop_exit
                _
            $region70: #{residual_ff.3} parent=61 // pred_fallthru
              _
          $region62: #{residual_ff.3} parent=57 // pred_fallthru
            _
          %411 = vnop
        $region58: #{residual_ff.3} parent=15 // pred_fallthru
          _
        // Predicated region
        $region96: #{residual_ff.3} parent=15 // pred_check
          %p412 = pneg %p97
        $region97: #{residual_ff.3} parent=15 // pred_check_branch
          %414 = sbr.rel (%p412) target = $region99
        $region98: #{residual_ff.3} parent=15 // pred_region
          %p415 = scmp.lt.s32.totalorder %s18, 1
          %s416 = scalar_select %p415, %s18, 1
          %s417 = scalar_lea.vmem %s2, %s416
        $region99: #{residual_ff.3} parent=15 // pred_fallthru
          _
        // Predicated region
        $region100: #{residual_ff.3} parent=15 // pred_check
          %p418 = pneg %p123
        $region101: #{residual_ff.3} parent=15 // pred_check_branch
          %420 = sbr.rel (%p418) target = $region103
        $region102: #{residual_ff.3} parent=15 // pred_region
          %p421 = scmp.lt.s32.totalorder %s18, 1
          %s422 = scalar_select %p421, %s18, 1
          %s423 = scalar_lea.vmem %s3, %s422
        $region103: #{residual_ff.3} parent=15 // pred_fallthru
          _
        // Predicated region
        $region104: #{residual_ff.3} parent=15 // pred_check
          %p424 = pneg %p149
        $region105: #{residual_ff.3} parent=15 // pred_check_branch
          %426 = sbr.rel (%p424) target = $region107
        $region106: #{residual_ff.3} parent=15 // pred_region
          %s427 = sand.u32 %s139, 1
          %s428 = sand.u32 %s139, 1
          %s429 = smul.addr %s428, 128
          %s430 = scalar_lea.vmem [#allocation4], %s429
          %s431 = smul.addr %s18, 8
          %s432 = scalar_lea.vmem %s4, %s431
          // Predicated region
          $region108: #{residual_ff.3} parent=106 // pred_check
            _
          $region109: #{residual_ff.3} parent=106 // pred_check_branch
            %434 = sbr.rel (0) target = $region111
          $region110: #{residual_ff.3} parent=106 // pred_region
            // Predicated region
            $region112: #{residual_ff.3} parent=110 // pred_check
              _
            $region113: #{residual_ff.3} parent=110 // pred_check_branch
              %436 = sbr.rel (0) target = $region115
            $region114: #{residual_ff.3} parent=110 // pred_region
              // Predicated region
              $region127: #{residual_ff.3} parent=114 // pred_check
                _
              $region128: #{residual_ff.3} parent=114 // pred_check_branch
                %481 = sbr.rel (0) target = $region130
              $region129: #{residual_ff.3} parent=114 // pred_region
                loop: start=0, step=1, limit=1
                $region131: #{residual_ff.3} parent=129 // loop_pre_header
                  _
                $region132: #{residual_ff.3} parent=129 // loop_header
                  %s483 = sphi 0, %s487
                  %p484 = scmp.ge.s32.totalorder %s483, 1
                  %s488 = sphi %s432, %s432
                  %s489 = sphi %s430, %s430
                $region133: #{residual_ff.3} parent=129 // loop_header_branch
                  %486 = sbr.rel (%p484) target = $region137
                $region134: #{residual_ff.3} parent=129 // loop_body
                  %v490 = vld [vmem:[%s488] sm:$0xff]
                  %491 = vst [vmem:[%s489] sm:$0xff] %v490
                  %v492 = vld [vmem:[%s488 + $0x10] sm:$0xff]
                  %493 = vst [vmem:[%s489 + $0x8] sm:$0xff] %v492
                  %v494 = vld [vmem:[%s488 + $0x20] sm:$0xff]
                  %495 = vst [vmem:[%s489 + $0x10] sm:$0xff] %v494
                  %v496 = vld [vmem:[%s488 + $0x30] sm:$0xff]
                  %497 = vst [vmem:[%s489 + $0x18] sm:$0xff] %v496
                  %v498 = vld [vmem:[%s488 + $0x40] sm:$0xff]
                  %499 = vst [vmem:[%s489 + $0x20] sm:$0xff] %v498
                  %v500 = vld [vmem:[%s488 + $0x50] sm:$0xff]
                  %501 = vst [vmem:[%s489 + $0x28] sm:$0xff] %v500
                  %v502 = vld [vmem:[%s488 + $0x60] sm:$0xff]
                  %503 = vst [vmem:[%s489 + $0x30] sm:$0xff] %v502
                  %v504 = vld [vmem:[%s488 + $0x70] sm:$0xff]
                  %505 = vst [vmem:[%s489 + $0x38] sm:$0xff] %v504
                  %v506 = vld [vmem:[%s488 + $0x80] sm:$0xff]
                  %507 = vst [vmem:[%s489 + $0x40] sm:$0xff] %v506
                  %v508 = vld [vmem:[%s488 + $0x90] sm:$0xff]
                  %509 = vst [vmem:[%s489 + $0x48] sm:$0xff] %v508
                  %v510 = vld [vmem:[%s488 + $0xa0] sm:$0xff]
                  %511 = vst [vmem:[%s489 + $0x50] sm:$0xff] %v510
                  %v512 = vld [vmem:[%s488 + $0xb0] sm:$0xff]
                  %513 = vst [vmem:[%s489 + $0x58] sm:$0xff] %v512
                  %v514 = vld [vmem:[%s488 + $0xc0] sm:$0xff]
                  %515 = vst [vmem:[%s489 + $0x60] sm:$0xff] %v514
                  %v516 = vld [vmem:[%s488 + $0xd0] sm:$0xff]
                  %517 = vst [vmem:[%s489 + $0x68] sm:$0xff] %v516
                  %v518 = vld [vmem:[%s488 + $0xe0] sm:$0xff]
                  %519 = vst [vmem:[%s489 + $0x70] sm:$0xff] %v518
                  %v520 = vld [vmem:[%s488 + $0xf0] sm:$0xff]
                  %521 = vst [vmem:[%s489 + $0x78] sm:$0xff] %v520
                $region135: #{residual_ff.3} parent=129 // loop_footer
                  %s487 = sadd.s32 1, %s483
                $region136: #{residual_ff.3} parent=129 // loop_footer_branch
                  %482 = sbr.rel target = $region132
                $region137: #{residual_ff.3} parent=129 // loop_exit
                  _
              $region130: #{residual_ff.3} parent=114 // pred_fallthru
                _
              // Predicated region
              $region138: #{residual_ff.3} parent=114 // pred_check
                _
              $region139: #{residual_ff.3} parent=114 // pred_check_branch
                %523 = sbr.rel target = $region141
              $region140: #{residual_ff.3} parent=114 // pred_region
                _
              $region141: #{residual_ff.3} parent=114 // pred_fallthru
                _
            $region115: #{residual_ff.3} parent=110 // pred_fallthru
              _
            // Predicated region
            $region116: #{residual_ff.3} parent=110 // pred_check
              _
            $region117: #{residual_ff.3} parent=110 // pred_check_branch
              %438 = sbr.rel target = $region119
            $region118: #{residual_ff.3} parent=110 // pred_region
              loop: start=0, step=1, limit=1
              $region120: #{residual_ff.3} parent=118 // loop_pre_header
                _
              $region121: #{residual_ff.3} parent=118 // loop_header
                %s441 = sphi 0, %s445
                %p442 = scmp.ge.s32.totalorder %s441, 1
                %s446 = sphi %s432, %s432
                %s447 = sphi %s430, %s430
              $region122: #{residual_ff.3} parent=118 // loop_header_branch
                %444 = sbr.rel (%p442) target = $region126
              $region123: #{residual_ff.3} parent=118 // loop_body
                %v448 = vld [vmem:[%s446] sm:$0xff]
                %449 = vst [vmem:[%s447] sm:$0xff] %v448
                %v450 = vld [vmem:[%s446 + $0x10] sm:$0xff]
                %451 = vst [vmem:[%s447 + $0x8] sm:$0xff] %v450
                %v452 = vld [vmem:[%s446 + $0x20] sm:$0xff]
                %453 = vst [vmem:[%s447 + $0x10] sm:$0xff] %v452
                %v454 = vld [vmem:[%s446 + $0x30] sm:$0xff]
                %455 = vst [vmem:[%s447 + $0x18] sm:$0xff] %v454
                %v456 = vld [vmem:[%s446 + $0x40] sm:$0xff]
                %457 = vst [vmem:[%s447 + $0x20] sm:$0xff] %v456
                %v458 = vld [vmem:[%s446 + $0x50] sm:$0xff]
                %459 = vst [vmem:[%s447 + $0x28] sm:$0xff] %v458
                %v460 = vld [vmem:[%s446 + $0x60] sm:$0xff]
                %461 = vst [vmem:[%s447 + $0x30] sm:$0xff] %v460
                %v462 = vld [vmem:[%s446 + $0x70] sm:$0xff]
                %463 = vst [vmem:[%s447 + $0x38] sm:$0xff] %v462
                %v464 = vld [vmem:[%s446 + $0x80] sm:$0xff]
                %465 = vst [vmem:[%s447 + $0x40] sm:$0xff] %v464
                %v466 = vld [vmem:[%s446 + $0x90] sm:$0xff]
                %467 = vst [vmem:[%s447 + $0x48] sm:$0xff] %v466
                %v468 = vld [vmem:[%s446 + $0xa0] sm:$0xff]
                %469 = vst [vmem:[%s447 + $0x50] sm:$0xff] %v468
                %v470 = vld [vmem:[%s446 + $0xb0] sm:$0xff]
                %471 = vst [vmem:[%s447 + $0x58] sm:$0xff] %v470
                %v472 = vld [vmem:[%s446 + $0xc0] sm:$0xff]
                %473 = vst [vmem:[%s447 + $0x60] sm:$0xff] %v472
                %v474 = vld [vmem:[%s446 + $0xd0] sm:$0xff]
                %475 = vst [vmem:[%s447 + $0x68] sm:$0xff] %v474
                %v476 = vld [vmem:[%s446 + $0xe0] sm:$0xff]
                %477 = vst [vmem:[%s447 + $0x70] sm:$0xff] %v476
                %v478 = vld [vmem:[%s446 + $0xf0] sm:$0xff]
                %479 = vst [vmem:[%s447 + $0x78] sm:$0xff] %v478
              $region124: #{residual_ff.3} parent=118 // loop_footer
                %s445 = sadd.s32 1, %s441
              $region125: #{residual_ff.3} parent=118 // loop_footer_branch
                %440 = sbr.rel target = $region121
              $region126: #{residual_ff.3} parent=118 // loop_exit
                _
            $region119: #{residual_ff.3} parent=110 // pred_fallthru
              _
          $region111: #{residual_ff.3} parent=106 // pred_fallthru
            _
          %524 = vnop
        $region107: #{residual_ff.3} parent=15 // pred_fallthru
          _
      $region16: #{residual_ff.3} parent=5 // pred_fallthru
        _
      %p525 = scmp.le.s32.totalorder 1, %s11
      %p526 = scmp.lt.s32.totalorder %s11, 5
      %p527 = pnand %p525, %p526
      %p528 = pneg %p527
      // Predicated region
      $region142: #{residual_ff.3} parent=5 // pred_check
        _
      $region143: #{residual_ff.3} parent=5 // pred_check_branch
        %530 = sbr.rel (%p527) target = $region145
      $region144: #{residual_ff.3} parent=5 // pred_region
        %s531 = ssub.s32 %s11, 1
        %s532 = sand.u32 %s36, 1
        %s533 = sand.u32 %s36, 1
        %s534 = smul.addr %s533, 128
        %s535 = scalar_lea.vmem [#allocation2], %s534
        // Predicated region
        $region146: #{residual_ff.3} parent=144 // pred_check
          %p536 = pneg %p49
        $region147: #{residual_ff.3} parent=144 // pred_check_branch
          %538 = sbr.rel (%p536) target = $region149
        $region148: #{residual_ff.3} parent=144 // pred_region
          _
        $region149: #{residual_ff.3} parent=144 // pred_fallthru
          _
        %s539 = sand.u32 %s64, 1
        %s540 = sand.u32 %s64, 1
        %s541 = smul.addr %s540, 64
        %s542 = scalar_lea.vmem [#allocation3], %s541
        // Predicated region
        $region150: #{residual_ff.3} parent=144 // pred_check
          %p543 = pneg %p77
        $region151: #{residual_ff.3} parent=144 // pred_check_branch
          %545 = sbr.rel (%p543) target = $region153
        $region152: #{residual_ff.3} parent=144 // pred_region
          _
        $region153: #{residual_ff.3} parent=144 // pred_fallthru
          _
        %s546 = sand.u32 %s142, 1
        %s547 = sand.u32 %s142, 1
        %s548 = smul.addr %s547, 128
        %s549 = scalar_lea.vmem [#allocation4], %s548
        // Predicated region
        $region154: #{residual_ff.3} parent=144 // pred_check
          %p550 = pneg %p155
        $region155: #{residual_ff.3} parent=144 // pred_check_branch
          %552 = sbr.rel (%p550) target = $region157
        $region156: #{residual_ff.3} parent=144 // pred_region
          _
        $region157: #{residual_ff.3} parent=144 // pred_fallthru
          _
        %s553 = sand.u32 %s36, 1
        %s554 = sand.u32 %s36, 1
        %s555 = smul.addr %s554, 128
        %s556 = scalar_lea.vmem [#allocation2], %s555
        %p557 = pneg %p49
        %p558 = pneg %p46
        %s559 = sand.u32 %s64, 1
        %s560 = sand.u32 %s64, 1
        %s561 = smul.addr %s560, 64
        %s562 = scalar_lea.vmem [#allocation3], %s561
        %p563 = pneg %p77
        %p564 = pneg %p74
        %p565 = scmp.lt.s32.totalorder %s20, 1
        %s566 = scalar_select %p565, %s20, 1
        %s567 = scalar_lea.vmem %s2, %s566
        %p568 = pneg %p103
        %p569 = pneg %p100
        %p570 = scmp.lt.s32.totalorder %s20, 1
        %s571 = scalar_select %p570, %s20, 1
        %s572 = scalar_lea.vmem %s3, %s571
        %p573 = pneg %p129
        %p574 = pneg %p126
        %s575 = sand.u32 %s142, 1
        %s576 = sand.u32 %s142, 1
        %s577 = smul.addr %s576, 128
        %s578 = scalar_lea.vmem [#allocation4], %s577
        %p579 = pneg %p155
        %p580 = pneg %p152
        %p581 = pneg %p181
        %p582 = pneg %p178
        %s583 = sand.u32 %s168, 1
        %s584 = sand.u32 %s168, 1
        %s585 = smul.addr %s584, 128
        %s586 = scalar_lea.vmem [#allocation5], %s585
        %s587 = smul.u32 16, %s21
        %p588 = scmp.lt.s32.totalorder %s20, 1
        %s589 = scalar_select %p588, %s20, 1
        %s590 = scalar_lea.vmem %s2, %s589
        %p591 = scmp.lt.s32.totalorder %s20, 1
        %s592 = scalar_select %p591, %s20, 1
        %s593 = scalar_lea.vmem %s3, %s592
        %p595 = scmp.eq.s32.totalorder %s21, 0
        // Predicated region
        $region158: #{residual_ff.3} parent=144 // pred_check
          %p596 = pneg %p595
        $region159: #{residual_ff.3} parent=144 // pred_check_branch
          %598 = sbr.rel (%p596) target = $region161
        $region160: #{residual_ff.3} parent=144 // pred_region
          %599 = vst [vmem:[%s586] sm:$0xff] 0.0
          %600 = vst [vmem:[%s586 + $0x8] sm:$0xff] 0.0
          %601 = vst [vmem:[%s586 + $0x10] sm:$0xff] 0.0
          %602 = vst [vmem:[%s586 + $0x18] sm:$0xff] 0.0
          %603 = vst [vmem:[%s586 + $0x20] sm:$0xff] 0.0
          %604 = vst [vmem:[%s586 + $0x28] sm:$0xff] 0.0
          %605 = vst [vmem:[%s586 + $0x30] sm:$0xff] 0.0
          %606 = vst [vmem:[%s586 + $0x38] sm:$0xff] 0.0
          %607 = vst [vmem:[%s586 + $0x40] sm:$0xff] 0.0
          %608 = vst [vmem:[%s586 + $0x48] sm:$0xff] 0.0
          %609 = vst [vmem:[%s586 + $0x50] sm:$0xff] 0.0
          %610 = vst [vmem:[%s586 + $0x58] sm:$0xff] 0.0
          %611 = vst [vmem:[%s586 + $0x60] sm:$0xff] 0.0
          %612 = vst [vmem:[%s586 + $0x68] sm:$0xff] 0.0
          %613 = vst [vmem:[%s586 + $0x70] sm:$0xff] 0.0
          %614 = vst [vmem:[%s586 + $0x78] sm:$0xff] 0.0
        $region161: #{residual_ff.3} parent=144 // pred_fallthru
          _
        %v615 = vld [vmem:[%s586] sm:$0xff]
        %v616 = vld [vmem:[%s586 + $0x8] sm:$0xff]
        %v617 = vld [vmem:[%s586 + $0x10] sm:$0xff]
        %v618 = vld [vmem:[%s586 + $0x18] sm:$0xff]
        %v619 = vld [vmem:[%s586 + $0x20] sm:$0xff]
        %v620 = vld [vmem:[%s586 + $0x28] sm:$0xff]
        %v621 = vld [vmem:[%s586 + $0x30] sm:$0xff]
        %v622 = vld [vmem:[%s586 + $0x38] sm:$0xff]
        %v623 = vld [vmem:[%s586 + $0x40] sm:$0xff]
        %v624 = vld [vmem:[%s586 + $0x48] sm:$0xff]
        %v625 = vld [vmem:[%s586 + $0x50] sm:$0xff]
        %v626 = vld [vmem:[%s586 + $0x58] sm:$0xff]
        %v627 = vld [vmem:[%s586 + $0x60] sm:$0xff]
        %v628 = vld [vmem:[%s586 + $0x68] sm:$0xff]
        %v629 = vld [vmem:[%s586 + $0x70] sm:$0xff]
        %v630 = vld [vmem:[%s586 + $0x78] sm:$0xff]
        %v631 = vld [vmem:[%s535] sm:$0xff]
        %v632 = vld [vmem:[%s535 + $0x8] sm:$0xff]
        %v633 = vld [vmem:[%s535 + $0x10] sm:$0xff]
        %v634 = vld [vmem:[%s535 + $0x18] sm:$0xff]
        %v635 = vld [vmem:[%s535 + $0x20] sm:$0xff]
        %v636 = vld [vmem:[%s535 + $0x28] sm:$0xff]
        %v637 = vld [vmem:[%s535 + $0x30] sm:$0xff]
        %v638 = vld [vmem:[%s535 + $0x38] sm:$0xff]
        %v639 = vld [vmem:[%s535 + $0x40] sm:$0xff]
        %v640 = vld [vmem:[%s535 + $0x48] sm:$0xff]
        %v641 = vld [vmem:[%s535 + $0x50] sm:$0xff]
        %v642 = vld [vmem:[%s535 + $0x58] sm:$0xff]
        %v643 = vld [vmem:[%s535 + $0x60] sm:$0xff]
        %v644 = vld [vmem:[%s535 + $0x68] sm:$0xff]
        %v645 = vld [vmem:[%s535 + $0x70] sm:$0xff]
        %v646 = vld [vmem:[%s535 + $0x78] sm:$0xff]
        %v647 = vpack.c.bf16 %v632, %v631
        %v648 = vpack.c.bf16 %v634, %v633
        %v649 = vpack.c.bf16 %v636, %v635
        %v650 = vpack.c.bf16 %v638, %v637
        %v651 = vpack.c.bf16 %v640, %v639
        %v652 = vpack.c.bf16 %v642, %v641
        %v653 = vpack.c.bf16 %v644, %v643
        %v654 = vpack.c.bf16 %v646, %v645
        %v655 = vld [vmem:[%s542] sm:$0xf]
        %v656 = vld [vmem:[%s542 + $0x4] sm:$0xf]
        %v657 = vld [vmem:[%s542 + $0x8] sm:$0xf]
        %v658 = vld [vmem:[%s542 + $0xc] sm:$0xf]
        %v659 = vld [vmem:[%s542 + $0x10] sm:$0xf]
        %v660 = vld [vmem:[%s542 + $0x14] sm:$0xf]
        %v661 = vld [vmem:[%s542 + $0x18] sm:$0xf]
        %v662 = vld [vmem:[%s542 + $0x1c] sm:$0xf]
        %v663 = vld [vmem:[%s542 + $0x20] sm:$0xf]
        %v664 = vld [vmem:[%s542 + $0x24] sm:$0xf]
        %v665 = vld [vmem:[%s542 + $0x28] sm:$0xf]
        %v666 = vld [vmem:[%s542 + $0x2c] sm:$0xf]
        %v667 = vld [vmem:[%s542 + $0x30] sm:$0xf]
        %v668 = vld [vmem:[%s542 + $0x34] sm:$0xf]
        %v669 = vld [vmem:[%s542 + $0x38] sm:$0xf]
        %v670 = vld [vmem:[%s542 + $0x3c] sm:$0xf]
        %v687 = vunpack.c.l.b16 %v655
        %v688 = vunpack.c.l.b16 %v656
        %v689 = vunpack.c.l.b16 %v657
        %v690 = vunpack.c.l.b16 %v658
        %v691 = vunpack.c.l.b16 %v659
        %v692 = vunpack.c.l.b16 %v660
        %v693 = vunpack.c.l.b16 %v661
        %v694 = vunpack.c.l.b16 %v662
        %v695 = vunpack.c.l.b16 %v663
        %v696 = vunpack.c.l.b16 %v664
        %v697 = vunpack.c.l.b16 %v665
        %v698 = vunpack.c.l.b16 %v666
        %v699 = vunpack.c.l.b16 %v667
        %v700 = vunpack.c.l.b16 %v668
        %v701 = vunpack.c.l.b16 %v669
        %v702 = vunpack.c.l.b16 %v670
        %v703 = vpack.c.b16 %v688, %v687
        %v704 = vpack.c.b16 %v690, %v689
        %v705 = vpack.c.b16 %v692, %v691
        %v706 = vpack.c.b16 %v694, %v693
        %v707 = vpack.c.b16 %v696, %v695
        %v708 = vpack.c.b16 %v698, %v697
        %v709 = vpack.c.b16 %v700, %v699
        %v710 = vpack.c.b16 %v702, %v701
        %719 = vmatprep.subr.bf16.mxu0 0
        %720 = vmatpush1.bf16.msra.mxu0 %v703
        %721 = vmatprep.subr.bf16.mxu0 0
        %722 = vmatpush1.bf16.msra.mxu0 %v704
        %723 = vmatprep.subr.bf16.mxu0 0
        %724 = vmatpush1.bf16.msra.mxu0 %v705
        %725 = vmatprep.subr.bf16.mxu0 0
        %726 = vmatpush1.bf16.msra.mxu0 %v706
        %727 = vmatprep.subr.bf16.mxu0 0
        %728 = vmatpush1.bf16.msra.mxu0 %v707
        %729 = vmatprep.subr.bf16.mxu0 0
        %730 = vmatpush1.bf16.msra.mxu0 %v708
        %731 = vmatprep.subr.bf16.mxu0 0
        %732 = vmatpush1.bf16.msra.mxu0 %v709
        %733 = vmatprep.subr.bf16.mxu0 0
        %734 = vmatpush1.bf16.msra.mxu0 %v710
        %735 = vmatprep.subr.bf16.mxu0 0
        %736 = vmatpush1.bf16.msra.mxu0 0
        %737 = vmatprep.subr.bf16.mxu0 0
        %738 = vmatpush1.bf16.msra.mxu0 0
        %739 = vmatprep.subr.bf16.mxu0 0
        %740 = vmatpush1.bf16.msra.mxu0 0
        %741 = vmatprep.subr.bf16.mxu0 0
        %742 = vmatpush1.bf16.msra.mxu0 0
        %743 = vmatprep.subr.bf16.mxu0 0
        %744 = vmatpush1.bf16.msra.mxu0 0
        %745 = vmatprep.subr.bf16.mxu0 0
        %746 = vmatpush1.bf16.msra.mxu0 0
        %747 = vmatprep.subr.bf16.mxu0 0
        %748 = vmatpush1.bf16.msra.mxu0 0
        %749 = vmatprep.subr.bf16.mxu0 0
        %750 = vmatpush1.bf16.msra.mxu0 0
        %751 = vmatprep.mubr.bf16.mxu0 0
        %752 = vmatmul.mubr.bf16.gmra.mrb[0].mxu0 %v647
        %v753 = vpop.f32.mrb[0].mxu0
        %v754 = vadd.f32 0.0, %v753
        %v755 = vpop.f32.mrb[0].mxu0
        %v756 = vpop.f32.mrb[0].mxu0
        %v757 = vadd.f32 0.0, %v756
        %v758 = vpop.f32.mrb[0].mxu0
        %759 = vmatprep.mubr.bf16.mxu0 0
        %760 = vmatmul.mubr.bf16.gmra.mrb[0].mxu0 %v648
        %v761 = vpop.f32.mrb[0].mxu0
        %v762 = vadd.f32 0.0, %v761
        %v763 = vpop.f32.mrb[0].mxu0
        %v764 = vpop.f32.mrb[0].mxu0
        %v765 = vadd.f32 0.0, %v764
        %v766 = vpop.f32.mrb[0].mxu0
        %767 = vmatprep.mubr.bf16.mxu0 0
        %768 = vmatmul.mubr.bf16.gmra.mrb[0].mxu0 %v649
        %v769 = vpop.f32.mrb[0].mxu0
        %v770 = vadd.f32 0.0, %v769
        %v771 = vpop.f32.mrb[0].mxu0
        %v772 = vpop.f32.mrb[0].mxu0
        %v773 = vadd.f32 0.0, %v772
        %v774 = vpop.f32.mrb[0].mxu0
        %775 = vmatprep.mubr.bf16.mxu0 0
        %776 = vmatmul.mubr.bf16.gmra.mrb[0].mxu0 %v650
        %v777 = vpop.f32.mrb[0].mxu0
        %v778 = vadd.f32 0.0, %v777
        %v779 = vpop.f32.mrb[0].mxu0
        %v780 = vpop.f32.mrb[0].mxu0
        %v781 = vadd.f32 0.0, %v780
        %v782 = vpop.f32.mrb[0].mxu0
        %783 = vmatprep.mubr.bf16.mxu0 0
        %784 = vmatmul.mubr.bf16.gmra.mrb[0].mxu0 %v651
        %v785 = vpop.f32.mrb[0].mxu0
        %v786 = vadd.f32 0.0, %v785
        %v787 = vpop.f32.mrb[0].mxu0
        %v788 = vpop.f32.mrb[0].mxu0
        %v789 = vadd.f32 0.0, %v788
        %v790 = vpop.f32.mrb[0].mxu0
        %791 = vmatprep.mubr.bf16.mxu0 0
        %792 = vmatmul.mubr.bf16.gmra.mrb[0].mxu0 %v652
        %v793 = vpop.f32.mrb[0].mxu0
        %v794 = vadd.f32 0.0, %v793
        %v795 = vpop.f32.mrb[0].mxu0
        %v796 = vpop.f32.mrb[0].mxu0
        %v797 = vadd.f32 0.0, %v796
        %v798 = vpop.f32.mrb[0].mxu0
        %799 = vmatprep.mubr.bf16.mxu0 0
        %800 = vmatmul.mubr.bf16.gmra.mrb[0].mxu0 %v653
        %v801 = vpop.f32.mrb[0].mxu0
        %v802 = vadd.f32 0.0, %v801
        %v803 = vpop.f32.mrb[0].mxu0
        %v804 = vpop.f32.mrb[0].mxu0
        %v805 = vadd.f32 0.0, %v804
        %v806 = vpop.f32.mrb[0].mxu0
        %807 = vmatprep.mubr.bf16.mxu0 0
        %808 = vmatmul.mubr.bf16.gmra.mrb[0].mxu0 %v654
        %v809 = vpop.f32.mrb[0].mxu0
        %v810 = vadd.f32 0.0, %v809
        %v811 = vpop.f32.mrb[0].mxu0
        %v812 = vpop.f32.mrb[0].mxu0
        %v813 = vadd.f32 0.0, %v812
        %v814 = vpop.f32.mrb[0].mxu0
        %815 = vdwg.mxu0
        %v816 = vadd.f32 %v615, %v754
        %v817 = vadd.f32 %v616, %v757
        %v818 = vadd.f32 %v617, %v762
        %v819 = vadd.f32 %v618, %v765
        %v820 = vadd.f32 %v619, %v770
        %v821 = vadd.f32 %v620, %v773
        %v822 = vadd.f32 %v621, %v778
        %v823 = vadd.f32 %v622, %v781
        %v824 = vadd.f32 %v623, %v786
        %v825 = vadd.f32 %v624, %v789
        %v826 = vadd.f32 %v625, %v794
        %v827 = vadd.f32 %v626, %v797
        %v828 = vadd.f32 %v627, %v802
        %v829 = vadd.f32 %v628, %v805
        %v830 = vadd.f32 %v629, %v810
        %v831 = vadd.f32 %v630, %v813
        %832 = vst [vmem:[%s586] sm:$0xff] %v816
        %833 = vst [vmem:[%s586 + $0x8] sm:$0xff] %v817
        %834 = vst [vmem:[%s586 + $0x10] sm:$0xff] %v818
        %835 = vst [vmem:[%s586 + $0x18] sm:$0xff] %v819
        %836 = vst [vmem:[%s586 + $0x20] sm:$0xff] %v820
        %837 = vst [vmem:[%s586 + $0x28] sm:$0xff] %v821
        %838 = vst [vmem:[%s586 + $0x30] sm:$0xff] %v822
        %839 = vst [vmem:[%s586 + $0x38] sm:$0xff] %v823
        %840 = vst [vmem:[%s586 + $0x40] sm:$0xff] %v824
        %841 = vst [vmem:[%s586 + $0x48] sm:$0xff] %v825
        %842 = vst [vmem:[%s586 + $0x50] sm:$0xff] %v826
        %843 = vst [vmem:[%s586 + $0x58] sm:$0xff] %v827
        %844 = vst [vmem:[%s586 + $0x60] sm:$0xff] %v828
        %845 = vst [vmem:[%s586 + $0x68] sm:$0xff] %v829
        %846 = vst [vmem:[%s586 + $0x70] sm:$0xff] %v830
        %847 = vst [vmem:[%s586 + $0x78] sm:$0xff] %v831
        %p848 = scmp.eq.s32.totalorder %s21, 1
        // Predicated region
        $region162: #{residual_ff.3} parent=144 // pred_check
          %p849 = pneg %p848
        $region163: #{residual_ff.3} parent=144 // pred_check_branch
          %851 = sbr.rel (%p849) target = $region165
        $region164: #{residual_ff.3} parent=144 // pred_region
          %v852 = vld [vmem:[%s586] sm:$0xff]
          %v853 = vld [vmem:[%s586 + $0x8] sm:$0xff]
          %v854 = vld [vmem:[%s586 + $0x10] sm:$0xff]
          %v855 = vld [vmem:[%s586 + $0x18] sm:$0xff]
          %v856 = vld [vmem:[%s586 + $0x20] sm:$0xff]
          %v857 = vld [vmem:[%s586 + $0x28] sm:$0xff]
          %v858 = vld [vmem:[%s586 + $0x30] sm:$0xff]
          %v859 = vld [vmem:[%s586 + $0x38] sm:$0xff]
          %v860 = vld [vmem:[%s586 + $0x40] sm:$0xff]
          %v861 = vld [vmem:[%s586 + $0x48] sm:$0xff]
          %v862 = vld [vmem:[%s586 + $0x50] sm:$0xff]
          %v863 = vld [vmem:[%s586 + $0x58] sm:$0xff]
          %v864 = vld [vmem:[%s586 + $0x60] sm:$0xff]
          %v865 = vld [vmem:[%s586 + $0x68] sm:$0xff]
          %v866 = vld [vmem:[%s586 + $0x70] sm:$0xff]
          %v867 = vld [vmem:[%s586 + $0x78] sm:$0xff]
          %v868 = vadd.f32 %v852, %v853
          %v869 = vadd.f32 %v868, %v854
          %v870 = vadd.f32 %v869, %v855
          %v871 = vadd.f32 %v870, %v856
          %v872 = vadd.f32 %v871, %v857
          %v873 = vadd.f32 %v872, %v858
          %v874 = vadd.f32 %v873, %v859
          %v875 = vadd.f32 %v874, %v860
          %v876 = vadd.f32 %v875, %v861
          %v877 = vadd.f32 %v876, %v862
          %v878 = vadd.f32 %v877, %v863
          %v879 = vadd.f32 %v878, %v864
          %v880 = vadd.f32 %v879, %v865
          %v881 = vadd.f32 %v880, %v866
          %v882 = vadd.f32 %v881, %v867
          %v883 = vrot.slane %v882, 4
          %v884 = vadd.f32 %v882, %v883
          %v885 = vrot.slane %v884, 2
          %v886 = vadd.f32 %v884, %v885
          %v887 = vrot.slane %v886, 1
          %v888 = vadd.f32 %v886, %v887
          %v889 = vrcp.pop 128.0
          %v890 = vmul.f32 %v888, %v889
          %v891 = vsub.f32 %v852, %v890
          %v892 = vsub.f32 %v853, %v890
          %v893 = vsub.f32 %v854, %v890
          %v894 = vsub.f32 %v855, %v890
          %v895 = vsub.f32 %v856, %v890
          %v896 = vsub.f32 %v857, %v890
          %v897 = vsub.f32 %v858, %v890
          %v898 = vsub.f32 %v859, %v890
          %v899 = vsub.f32 %v860, %v890
          %v900 = vsub.f32 %v861, %v890
          %v901 = vsub.f32 %v862, %v890
          %v902 = vsub.f32 %v863, %v890
          %v903 = vsub.f32 %v864, %v890
          %v904 = vsub.f32 %v865, %v890
          %v905 = vsub.f32 %v866, %v890
          %v906 = vsub.f32 %v867, %v890
          %v907 = vmul.f32 %v891, %v891
          %v908 = vmul.f32 %v892, %v892
          %v909 = vmul.f32 %v893, %v893
          %v910 = vmul.f32 %v894, %v894
          %v911 = vmul.f32 %v895, %v895
          %v912 = vmul.f32 %v896, %v896
          %v913 = vmul.f32 %v897, %v897
          %v914 = vmul.f32 %v898, %v898
          %v915 = vmul.f32 %v899, %v899
          %v916 = vmul.f32 %v900, %v900
          %v917 = vmul.f32 %v901, %v901
          %v918 = vmul.f32 %v902, %v902
          %v919 = vmul.f32 %v903, %v903
          %v920 = vmul.f32 %v904, %v904
          %v921 = vmul.f32 %v905, %v905
          %v922 = vmul.f32 %v906, %v906
          %v923 = vadd.f32 %v907, %v908
          %v924 = vadd.f32 %v923, %v909
          %v925 = vadd.f32 %v924, %v910
          %v926 = vadd.f32 %v925, %v911
          %v927 = vadd.f32 %v926, %v912
          %v928 = vadd.f32 %v927, %v913
          %v929 = vadd.f32 %v928, %v914
          %v930 = vadd.f32 %v929, %v915
          %v931 = vadd.f32 %v930, %v916
          %v932 = vadd.f32 %v931, %v917
          %v933 = vadd.f32 %v932, %v918
          %v934 = vadd.f32 %v933, %v919
          %v935 = vadd.f32 %v934, %v920
          %v936 = vadd.f32 %v935, %v921
          %v937 = vadd.f32 %v936, %v922
          %v938 = vrot.slane %v937, 4
          %v939 = vadd.f32 %v937, %v938
          %v940 = vrot.slane %v939, 2
          %v941 = vadd.f32 %v939, %v940
          %v942 = vrot.slane %v941, 1
          %v943 = vadd.f32 %v941, %v942
          %v944 = vmul.f32 %v943, %v889
          %v945 = vadd.f32 %v944, 1e-05
          %v946 = vrsqrt.pop %v945
          %v947 = vmul.f32 %v891, %v946
          %v948 = vmul.f32 %v892, %v946
          %v949 = vmul.f32 %v893, %v946
          %v950 = vmul.f32 %v894, %v946
          %v951 = vmul.f32 %v895, %v946
          %v952 = vmul.f32 %v896, %v946
          %v953 = vmul.f32 %v897, %v946
          %v954 = vmul.f32 %v898, %v946
          %v955 = vmul.f32 %v899, %v946
          %v956 = vmul.f32 %v900, %v946
          %v957 = vmul.f32 %v901, %v946
          %v958 = vmul.f32 %v902, %v946
          %v959 = vmul.f32 %v903, %v946
          %v960 = vmul.f32 %v904, %v946
          %v961 = vmul.f32 %v905, %v946
          %v962 = vmul.f32 %v906, %v946
          %v963 = vld [vmem:[%s590] sm:$0x1]
          %v965 = vlaneseq
          %v966 = vshrl.u32 %v965, 7
          %v967 = vsub.s32 0, %v966
          %v968 = vrot.slane %v963, %v967
          %v970 = vmul.f32 %v947, %v968
          %v971 = vmul.f32 %v948, %v968
          %v972 = vmul.f32 %v949, %v968
          %v973 = vmul.f32 %v950, %v968
          %v974 = vmul.f32 %v951, %v968
          %v975 = vmul.f32 %v952, %v968
          %v976 = vmul.f32 %v953, %v968
          %v977 = vmul.f32 %v954, %v968
          %v978 = vmul.f32 %v955, %v968
          %v979 = vmul.f32 %v956, %v968
          %v980 = vmul.f32 %v957, %v968
          %v981 = vmul.f32 %v958, %v968
          %v982 = vmul.f32 %v959, %v968
          %v983 = vmul.f32 %v960, %v968
          %v984 = vmul.f32 %v961, %v968
          %v985 = vmul.f32 %v962, %v968
          %v986 = vld [vmem:[%s593] sm:$0x1]
          %v988 = vlaneseq
          %v989 = vshrl.u32 %v988, 7
          %v990 = vsub.s32 0, %v989
          %v991 = vrot.slane %v986, %v990
          %v993 = vadd.f32 %v970, %v991
          %v994 = vadd.f32 %v971, %v991
          %v995 = vadd.f32 %v972, %v991
          %v996 = vadd.f32 %v973, %v991
          %v997 = vadd.f32 %v974, %v991
          %v998 = vadd.f32 %v975, %v991
          %v999 = vadd.f32 %v976, %v991
          %v1000 = vadd.f32 %v977, %v991
          %v1001 = vadd.f32 %v978, %v991
          %v1002 = vadd.f32 %v979, %v991
          %v1003 = vadd.f32 %v980, %v991
          %v1004 = vadd.f32 %v981, %v991
          %v1005 = vadd.f32 %v982, %v991
          %v1006 = vadd.f32 %v983, %v991
          %v1007 = vadd.f32 %v984, %v991
          %v1008 = vadd.f32 %v985, %v991
          %v1009 = vtanh.pop %v993
          %v1010 = vtanh.pop %v994
          %v1011 = vtanh.pop %v995
          %v1012 = vtanh.pop %v996
          %v1013 = vtanh.pop %v997
          %v1014 = vtanh.pop %v998
          %v1015 = vtanh.pop %v999
          %v1016 = vtanh.pop %v1000
          %v1017 = vtanh.pop %v1001
          %v1018 = vtanh.pop %v1002
          %v1019 = vtanh.pop %v1003
          %v1020 = vtanh.pop %v1004
          %v1021 = vtanh.pop %v1005
          %v1022 = vtanh.pop %v1006
          %v1023 = vtanh.pop %v1007
          %v1024 = vtanh.pop %v1008
          %v1025 = vld [vmem:[%s549] sm:$0xff]
          %v1026 = vld [vmem:[%s549 + $0x8] sm:$0xff]
          %v1027 = vld [vmem:[%s549 + $0x10] sm:$0xff]
          %v1028 = vld [vmem:[%s549 + $0x18] sm:$0xff]
          %v1029 = vld [vmem:[%s549 + $0x20] sm:$0xff]
          %v1030 = vld [vmem:[%s549 + $0x28] sm:$0xff]
          %v1031 = vld [vmem:[%s549 + $0x30] sm:$0xff]
          %v1032 = vld [vmem:[%s549 + $0x38] sm:$0xff]
          %v1033 = vld [vmem:[%s549 + $0x40] sm:$0xff]
          %v1034 = vld [vmem:[%s549 + $0x48] sm:$0xff]
          %v1035 = vld [vmem:[%s549 + $0x50] sm:$0xff]
          %v1036 = vld [vmem:[%s549 + $0x58] sm:$0xff]
          %v1037 = vld [vmem:[%s549 + $0x60] sm:$0xff]
          %v1038 = vld [vmem:[%s549 + $0x68] sm:$0xff]
          %v1039 = vld [vmem:[%s549 + $0x70] sm:$0xff]
          %v1040 = vld [vmem:[%s549 + $0x78] sm:$0xff]
          %v1041 = vadd.f32 %v1009, %v1025
          %v1042 = vadd.f32 %v1010, %v1026
          %v1043 = vadd.f32 %v1011, %v1027
          %v1044 = vadd.f32 %v1012, %v1028
          %v1045 = vadd.f32 %v1013, %v1029
          %v1046 = vadd.f32 %v1014, %v1030
          %v1047 = vadd.f32 %v1015, %v1031
          %v1048 = vadd.f32 %v1016, %v1032
          %v1049 = vadd.f32 %v1017, %v1033
          %v1050 = vadd.f32 %v1018, %v1034
          %v1051 = vadd.f32 %v1019, %v1035
          %v1052 = vadd.f32 %v1020, %v1036
          %v1053 = vadd.f32 %v1021, %v1037
          %v1054 = vadd.f32 %v1022, %v1038
          %v1055 = vadd.f32 %v1023, %v1039
          %v1056 = vadd.f32 %v1024, %v1040
          %1057 = vst [vmem:[%s586] sm:$0xff] %v1041
          %1058 = vst [vmem:[%s586 + $0x8] sm:$0xff] %v1042
          %1059 = vst [vmem:[%s586 + $0x10] sm:$0xff] %v1043
          %1060 = vst [vmem:[%s586 + $0x18] sm:$0xff] %v1044
          %1061 = vst [vmem:[%s586 + $0x20] sm:$0xff] %v1045
          %1062 = vst [vmem:[%s586 + $0x28] sm:$0xff] %v1046
          %1063 = vst [vmem:[%s586 + $0x30] sm:$0xff] %v1047
          %1064 = vst [vmem:[%s586 + $0x38] sm:$0xff] %v1048
          %1065 = vst [vmem:[%s586 + $0x40] sm:$0xff] %v1049
          %1066 = vst [vmem:[%s586 + $0x48] sm:$0xff] %v1050
          %1067 = vst [vmem:[%s586 + $0x50] sm:$0xff] %v1051
          %1068 = vst [vmem:[%s586 + $0x58] sm:$0xff] %v1052
          %1069 = vst [vmem:[%s586 + $0x60] sm:$0xff] %v1053
          %1070 = vst [vmem:[%s586 + $0x68] sm:$0xff] %v1054
          %1071 = vst [vmem:[%s586 + $0x70] sm:$0xff] %v1055
          %1072 = vst [vmem:[%s586 + $0x78] sm:$0xff] %v1056
        $region165: #{residual_ff.3} parent=144 // pred_fallthru
          _
        %s1073 = sand.u32 %s168, 1
        %s1074 = sand.u32 %s168, 1
        %s1075 = smul.addr %s1074, 128
        %s1076 = scalar_lea.vmem [#allocation5], %s1075
        // Predicated region
        $region166: #{residual_ff.3} parent=144 // pred_check
          %p1077 = pneg %p178
        $region167: #{residual_ff.3} parent=144 // pred_check_branch
          %1079 = sbr.rel (%p1077) target = $region169
        $region168: #{residual_ff.3} parent=144 // pred_region
          %s1080 = smul.addr %s20, 8
          %s1081 = scalar_lea.vmem %s5, %s1080
          // Predicated region
          $region170: #{residual_ff.3} parent=168 // pred_check
            _
          $region171: #{residual_ff.3} parent=168 // pred_check_branch
            %1083 = sbr.rel (0) target = $region173
          $region172: #{residual_ff.3} parent=168 // pred_region
            // Predicated region
            $region174: #{residual_ff.3} parent=172 // pred_check
              _
            $region175: #{residual_ff.3} parent=172 // pred_check_branch
              %1085 = sbr.rel (0) target = $region177
            $region176: #{residual_ff.3} parent=172 // pred_region
              // Predicated region
              $region189: #{residual_ff.3} parent=176 // pred_check
                _
              $region190: #{residual_ff.3} parent=176 // pred_check_branch
                %1130 = sbr.rel (0) target = $region192
              $region191: #{residual_ff.3} parent=176 // pred_region
                loop: start=0, step=1, limit=1
                $region193: #{residual_ff.3} parent=191 // loop_pre_header
                  _
                $region194: #{residual_ff.3} parent=191 // loop_header
                  %s1132 = sphi 0, %s1136
                  %p1133 = scmp.ge.s32.totalorder %s1132, 1
                  %s1137 = sphi %s1076, %s1076
                  %s1138 = sphi %s1081, %s1081
                $region195: #{residual_ff.3} parent=191 // loop_header_branch
                  %1135 = sbr.rel (%p1133) target = $region199
                $region196: #{residual_ff.3} parent=191 // loop_body
                  %v1139 = vld [vmem:[%s1137] sm:$0xff]
                  %1140 = vst [vmem:[%s1138] sm:$0xff] %v1139
                  %v1141 = vld [vmem:[%s1137 + $0x8] sm:$0xff]
                  %1142 = vst [vmem:[%s1138 + $0x10] sm:$0xff] %v1141
                  %v1143 = vld [vmem:[%s1137 + $0x10] sm:$0xff]
                  %1144 = vst [vmem:[%s1138 + $0x20] sm:$0xff] %v1143
                  %v1145 = vld [vmem:[%s1137 + $0x18] sm:$0xff]
                  %1146 = vst [vmem:[%s1138 + $0x30] sm:$0xff] %v1145
                  %v1147 = vld [vmem:[%s1137 + $0x20] sm:$0xff]
                  %1148 = vst [vmem:[%s1138 + $0x40] sm:$0xff] %v1147
                  %v1149 = vld [vmem:[%s1137 + $0x28] sm:$0xff]
                  %1150 = vst [vmem:[%s1138 + $0x50] sm:$0xff] %v1149
                  %v1151 = vld [vmem:[%s1137 + $0x30] sm:$0xff]
                  %1152 = vst [vmem:[%s1138 + $0x60] sm:$0xff] %v1151
                  %v1153 = vld [vmem:[%s1137 + $0x38] sm:$0xff]
                  %1154 = vst [vmem:[%s1138 + $0x70] sm:$0xff] %v1153
                  %v1155 = vld [vmem:[%s1137 + $0x40] sm:$0xff]
                  %1156 = vst [vmem:[%s1138 + $0x80] sm:$0xff] %v1155
                  %v1157 = vld [vmem:[%s1137 + $0x48] sm:$0xff]
                  %1158 = vst [vmem:[%s1138 + $0x90] sm:$0xff] %v1157
                  %v1159 = vld [vmem:[%s1137 + $0x50] sm:$0xff]
                  %1160 = vst [vmem:[%s1138 + $0xa0] sm:$0xff] %v1159
                  %v1161 = vld [vmem:[%s1137 + $0x58] sm:$0xff]
                  %1162 = vst [vmem:[%s1138 + $0xb0] sm:$0xff] %v1161
                  %v1163 = vld [vmem:[%s1137 + $0x60] sm:$0xff]
                  %1164 = vst [vmem:[%s1138 + $0xc0] sm:$0xff] %v1163
                  %v1165 = vld [vmem:[%s1137 + $0x68] sm:$0xff]
                  %1166 = vst [vmem:[%s1138 + $0xd0] sm:$0xff] %v1165
                  %v1167 = vld [vmem:[%s1137 + $0x70] sm:$0xff]
                  %1168 = vst [vmem:[%s1138 + $0xe0] sm:$0xff] %v1167
                  %v1169 = vld [vmem:[%s1137 + $0x78] sm:$0xff]
                  %1170 = vst [vmem:[%s1138 + $0xf0] sm:$0xff] %v1169
                $region197: #{residual_ff.3} parent=191 // loop_footer
                  %s1136 = sadd.s32 1, %s1132
                $region198: #{residual_ff.3} parent=191 // loop_footer_branch
                  %1131 = sbr.rel target = $region194
                $region199: #{residual_ff.3} parent=191 // loop_exit
                  _
              $region192: #{residual_ff.3} parent=176 // pred_fallthru
                _
              // Predicated region
              $region200: #{residual_ff.3} parent=176 // pred_check
                _
              $region201: #{residual_ff.3} parent=176 // pred_check_branch
                %1172 = sbr.rel target = $region203
              $region202: #{residual_ff.3} parent=176 // pred_region
                _
              $region203: #{residual_ff.3} parent=176 // pred_fallthru
                _
            $region177: #{residual_ff.3} parent=172 // pred_fallthru
              _
            // Predicated region
            $region178: #{residual_ff.3} parent=172 // pred_check
              _
            $region179: #{residual_ff.3} parent=172 // pred_check_branch
              %1087 = sbr.rel target = $region181
            $region180: #{residual_ff.3} parent=172 // pred_region
              loop: start=0, step=1, limit=1
              $region182: #{residual_ff.3} parent=180 // loop_pre_header
                _
              $region183: #{residual_ff.3} parent=180 // loop_header
                %s1090 = sphi 0, %s1094
                %p1091 = scmp.ge.s32.totalorder %s1090, 1
                %s1095 = sphi %s1076, %s1076
                %s1096 = sphi %s1081, %s1081
              $region184: #{residual_ff.3} parent=180 // loop_header_branch
                %1093 = sbr.rel (%p1091) target = $region188
              $region185: #{residual_ff.3} parent=180 // loop_body
                %v1097 = vld [vmem:[%s1095] sm:$0xff]
                %1098 = vst [vmem:[%s1096] sm:$0xff] %v1097
                %v1099 = vld [vmem:[%s1095 + $0x8] sm:$0xff]
                %1100 = vst [vmem:[%s1096 + $0x10] sm:$0xff] %v1099
                %v1101 = vld [vmem:[%s1095 + $0x10] sm:$0xff]
                %1102 = vst [vmem:[%s1096 + $0x20] sm:$0xff] %v1101
                %v1103 = vld [vmem:[%s1095 + $0x18] sm:$0xff]
                %1104 = vst [vmem:[%s1096 + $0x30] sm:$0xff] %v1103
                %v1105 = vld [vmem:[%s1095 + $0x20] sm:$0xff]
                %1106 = vst [vmem:[%s1096 + $0x40] sm:$0xff] %v1105
                %v1107 = vld [vmem:[%s1095 + $0x28] sm:$0xff]
                %1108 = vst [vmem:[%s1096 + $0x50] sm:$0xff] %v1107
                %v1109 = vld [vmem:[%s1095 + $0x30] sm:$0xff]
                %1110 = vst [vmem:[%s1096 + $0x60] sm:$0xff] %v1109
                %v1111 = vld [vmem:[%s1095 + $0x38] sm:$0xff]
                %1112 = vst [vmem:[%s1096 + $0x70] sm:$0xff] %v1111
                %v1113 = vld [vmem:[%s1095 + $0x40] sm:$0xff]
                %1114 = vst [vmem:[%s1096 + $0x80] sm:$0xff] %v1113
                %v1115 = vld [vmem:[%s1095 + $0x48] sm:$0xff]
                %1116 = vst [vmem:[%s1096 + $0x90] sm:$0xff] %v1115
                %v1117 = vld [vmem:[%s1095 + $0x50] sm:$0xff]
                %1118 = vst [vmem:[%s1096 + $0xa0] sm:$0xff] %v1117
                %v1119 = vld [vmem:[%s1095 + $0x58] sm:$0xff]
                %1120 = vst [vmem:[%s1096 + $0xb0] sm:$0xff] %v1119
                %v1121 = vld [vmem:[%s1095 + $0x60] sm:$0xff]
                %1122 = vst [vmem:[%s1096 + $0xc0] sm:$0xff] %v1121
                %v1123 = vld [vmem:[%s1095 + $0x68] sm:$0xff]
                %1124 = vst [vmem:[%s1096 + $0xd0] sm:$0xff] %v1123
                %v1125 = vld [vmem:[%s1095 + $0x70] sm:$0xff]
                %1126 = vst [vmem:[%s1096 + $0xe0] sm:$0xff] %v1125
                %v1127 = vld [vmem:[%s1095 + $0x78] sm:$0xff]
                %1128 = vst [vmem:[%s1096 + $0xf0] sm:$0xff] %v1127
              $region186: #{residual_ff.3} parent=180 // loop_footer
                %s1094 = sadd.s32 1, %s1090
              $region187: #{residual_ff.3} parent=180 // loop_footer_branch
                %1089 = sbr.rel target = $region183
              $region188: #{residual_ff.3} parent=180 // loop_exit
                _
            $region181: #{residual_ff.3} parent=172 // pred_fallthru
              _
          $region173: #{residual_ff.3} parent=168 // pred_fallthru
            _
          %1173 = vnop
        $region169: #{residual_ff.3} parent=144 // pred_fallthru
          _
      $region145: #{residual_ff.3} parent=5 // pred_fallthru
        _
      %p1174 = scmp.le.s32.totalorder 2, %s11
      // Predicated region
      $region204: #{residual_ff.3} parent=5 // pred_check
        %p1175 = pneg %p1174
      $region205: #{residual_ff.3} parent=5 // pred_check_branch
        %1177 = sbr.rel (%p1175) target = $region207
      $region206: #{residual_ff.3} parent=5 // pred_region
        %s1178 = ssub.s32 %s11, 2
        // Predicated region
        $region208: #{residual_ff.3} parent=206 // pred_check
          %p1179 = pneg %p184
        $region209: #{residual_ff.3} parent=206 // pred_check_branch
          %1181 = sbr.rel (%p1179) target = $region211
        $region210: #{residual_ff.3} parent=206 // pred_region
          %s1182 = sand.u32 %s169, 1
          %s1183 = sand.u32 %s169, 1
          %s1184 = smul.addr %s1183, 128
          %s1185 = scalar_lea.vmem [#allocation5], %s1184
        $region211: #{residual_ff.3} parent=206 // pred_fallthru
          _
      $region207: #{residual_ff.3} parent=5 // pred_fallthru
        _
    $region6: #{residual_ff.3} parent=1 // loop_footer
      %s15 = sadd.s32 1, %s11
    $region7: #{residual_ff.3} parent=1 // loop_footer_branch
      %10 = sbr.rel target = $region3
    $region8: #{residual_ff.3} parent=1 // loop_exit
      _

</llo_original>
